<compile_context>
chip_gen: v7x
topology: tpu7x:2x2x1
jax: 0.10.0
libtpu: 0.0.40
codegen_flags: <defaults>
</compile_context>

<pallas_src>
import functools
import math

import jax
import jax.numpy as jnp
from jax.experimental import pallas as pl
from jax.experimental.pallas import tpu as pltpu


def _layernorm(x, gamma, beta, eps=1e-5):
    # x: (N, dmodel); gamma/beta: (1, dmodel); stats in f32
    mean = jnp.mean(x, axis=-1, keepdims=True)
    var = jnp.mean((x - mean) ** 2, axis=-1, keepdims=True)
    return (x - mean) * jax.lax.rsqrt(var + eps) * gamma + beta


def _softmax(x):
    # softmax over last axis, numerically stable; EUP approximate reciprocal
    # instead of a VALU divide.
    mx = jnp.max(x, axis=-1, keepdims=True)
    e = jnp.exp(x - mx)
    return e * pl.reciprocal(jnp.sum(e, axis=-1, keepdims=True), approx=True)


def decoder_kernel(
    # batched inputs (one batch *block* per grid step)
    x_ref, keys_ref, values_ref,
    # packed / fused parameters
    wqkv_ref, bqkv_ref, wu_ref, wedq_ref, bedq_ref, wedu_ref,
    wf1_ref, bf1_ref, wf2_ref, bdm_ref, gam_ref, bet_ref,
    # outputs
    y_ref, scores_ref,
    *, bblk, m, dmodel, hdq, hdk, hdv, dk_scale,
):
    rows = bblk * m

    # Flatten the batch block into rows (free reshape: leading dims merge only).
    x2 = x_ref[...].reshape(rows, dmodel)

    # Hoist small packed params once per kernel invocation.
    gam = gam_ref[...]          # (3, dmodel) LayerNorm gammas (norm1/2/3)
    bet = bet_ref[...]          # (3, dmodel) LayerNorm betas
    bdm = bdm_ref[...]          # (3, dmodel) biases: unify / ed_unify / ff2

    # ---- fused Q|K|V projection: one MXU pass with N = hdq + hdk + hdv ----
    qkv = jnp.dot(x2, wqkv_ref[...], preferred_element_type=jnp.float32) + bqkv_ref[...]
    q = qkv[:, :hdq] * dk_scale              # fold 1/sqrt(dk) into Q
    k = qkv[:, hdq:hdq + hdk]
    v = qkv[:, hdq + hdk:hdq + hdk + hdv]

    # ---- self attention (batched over bblk; contract last axes, no k.T) ----
    q3 = q.reshape(bblk, m, hdq)
    k3 = k.reshape(bblk, m, hdk)
    v3 = v.reshape(bblk, m, hdv)
    s = _softmax(jnp.einsum('bqd,bkd->bqk', q3, k3,
                            preferred_element_type=jnp.float32))
    attn = jnp.einsum('bqk,bkd->bqd', s, v3, preferred_element_type=jnp.float32)
    ua = jnp.dot(attn.reshape(rows, hdv), wu_ref[...],
                 preferred_element_type=jnp.float32) + bdm[0:1]
    n1 = _layernorm(x2 + ua, gam[0:1], bet[0:1])

    # ---- encoder-decoder attention ----
    q2 = (jnp.dot(n1, wedq_ref[...], preferred_element_type=jnp.float32)
          + bedq_ref[...]) * dk_scale
    s2 = _softmax(jnp.einsum('bqd,bkd->bqk', q2.reshape(bblk, m, hdq), keys_ref[...],
                             preferred_element_type=jnp.float32))
    attn2 = jnp.einsum('bqk,bkd->bqd', s2, values_ref[...],
                       preferred_element_type=jnp.float32)
    ua2 = jnp.dot(attn2.reshape(rows, hdv), wedu_ref[...],
                  preferred_element_type=jnp.float32) + bdm[1:2]
    n2 = _layernorm(ua2 + n1, gam[1:2], bet[1:2])

    # ---- feed-forward ----
    h = jnp.maximum(jnp.dot(n2, wf1_ref[...], preferred_element_type=jnp.float32)
                    + bf1_ref[...], 0.0)
    ff = jnp.dot(h, wf2_ref[...], preferred_element_type=jnp.float32) + bdm[2:3]
    y = _layernorm(ff + n2, gam[2:3], bet[2:3])

    # Stores cover bblk*m sublanes per grid step (batch flattened into rows).
    # TODO(synk): a fully lane-dense (1, rows*dmodel) output slab would require a
    # sublane->lane relayout reshape; skipped to keep lowering robust.
    y_ref[...] = y.astype(y_ref.dtype)
    scores_ref[...] = s2.reshape(rows, m).astype(scores_ref.dtype)


def _pick_batch_block(d, max_block=8):
    """Largest divisor of d not exceeding max_block."""
    for b in range(min(d, max_block), 0, -1):
        if d % b == 0:
            return b
    return 1


def pack_params(params):
    """Fuse the PyTorch-layout parameter tuple into the kernel's packed form."""
    (wq, bq, wk, bk, wv, bv, wu, bu, g1, be1,
     wedq, bedq, wedu, bedu, g2, be2,
     wf1, bf1, wf2, bf2, g3, be3) = params
    wqkv = jnp.concatenate([wq, wk, wv], axis=1)        # (dmodel, hdq+hdk+hdv)
    bqkv = jnp.concatenate([bq, bk, bv], axis=1)        # (1, hdq+hdk+hdv)
    bdm = jnp.concatenate([bu, bedu, bf2], axis=0)      # (3, dmodel)
    gammas = jnp.concatenate([g1, g2, g3], axis=0)      # (3, dmodel)
    betas = jnp.concatenate([be1, be2, be3], axis=0)    # (3, dmodel)
    return (wqkv, bqkv, wu, wedq, bedq, wedu, wf1, bf1, wf2, bdm, gammas, betas)


def transformer_decoder(x, keys, values, packed_params, *, dk, batch_block=None):
    """x: (d, m, dmodel); keys: (d, m, h*dk); values: (d, m, h*dv)."""
    d, m, dmodel = x.shape
    hdk = keys.shape[-1]
    hdv = values.shape[-1]

    (wqkv, bqkv, wu, wedq, bedq, wedu, wf1, bf1, wf2, bdm, gammas, betas) = packed_params
    hdq = wedq.shape[1]

    bblk = batch_block if batch_block is not None else _pick_batch_block(d)
    assert d % bblk == 0, "batch dim must be divisible by the batch block"
    nblk = d // bblk

    def batched_spec(shape):
        return pl.BlockSpec((bblk,) + shape, lambda i: (i, 0, 0))

    def full_spec(arr):
        nd = arr.ndim
        return pl.BlockSpec(arr.shape, lambda i, _nd=nd: (0,) * _nd)

    weights = packed_params
    weight_specs = [full_spec(p) for p in weights]

    kernel = functools.partial(
        decoder_kernel,
        bblk=bblk, m=m, dmodel=dmodel, hdq=hdq, hdk=hdk, hdv=hdv,
        dk_scale=1.0 / math.sqrt(dk),
    )

    y_flat, scores_flat = pl.pallas_call(
        kernel,
        out_shape=(
            jax.ShapeDtypeStruct((d * m, dmodel), jnp.float32),
            jax.ShapeDtypeStruct((d * m, m), jnp.float32),
        ),
        grid_spec=pltpu.PrefetchScalarGridSpec(
            num_scalar_prefetch=0,
            grid=(nblk,),
            in_specs=[
                batched_spec((m, dmodel)),
                batched_spec((m, hdk)),
                batched_spec((m, hdv)),
            ] + weight_specs,
            out_specs=(
                pl.BlockSpec((bblk * m, dmodel), lambda i: (i, 0)),
                pl.BlockSpec((bblk * m, m), lambda i: (i, 0)),
            ),
        ),
        compiler_params=pltpu.CompilerParams(
            dimension_semantics=("parallel",),   # batch-block axis feeds both v7x TCs
            vmem_limit_bytes=32 * 1024 * 1024,
        ),
    )(x, keys, values, *weights)

    return y_flat.reshape(d, m, dmodel), scores_flat.reshape(d, m, m)


def init_params(key, dmodel, dq, dk, dv, heads, feedforward):
    """Deterministic parameter init. Linear weights are stored pre-transposed
    as (in, out) so the kernel computes x @ W + b (equivalent to PyTorch's
    x @ W_pt.T + b)."""
    def lin(key, fan_in, fan_out):
        k1, k2 = jax.random.split(key)
        bound = 1.0 / math.sqrt(fan_in)
        w = jax.random.uniform(k1, (fan_in, fan_out), jnp.float32, -bound, bound)
        b = jax.random.uniform(k2, (1, fan_out), jnp.float32, -bound, bound)
        return w, b

    keys_ = jax.random.split(key, 8)
    wq, bq = lin(keys_[0], dmodel, heads * dq)
    wk, bk = lin(keys_[1], dmodel, heads * dk)
    wv, bv = lin(keys_[2], dmodel, heads * dv)
    wu, bu = lin(keys_[3], heads * dv, dmodel)
    wedq, bedq = lin(keys_[4], dmodel, heads * dq)
    wedu, bedu = lin(keys_[5], heads * dv, dmodel)
    wf1, bf1 = lin(keys_[6], dmodel, feedforward)
    wf2, bf2 = lin(keys_[7], feedforward, dmodel)

    g1 = jnp.ones((1, dmodel), jnp.float32); be1 = jnp.zeros((1, dmodel), jnp.float32)
    g2 = jnp.ones((1, dmodel), jnp.float32); be2 = jnp.zeros((1, dmodel), jnp.float32)
    g3 = jnp.ones((1, dmodel), jnp.float32); be3 = jnp.zeros((1, dmodel), jnp.float32)

    return (wq, bq, wk, bk, wv, bv, wu, bu, g1, be1,
            wedq, bedq, wedu, bedu, g2, be2,
            wf1, bf1, wf2, bf2, g3, be3)


def ref_forward(x, ek, ev, params, dk):
    """Pure-JAX reference of the PyTorch forward() semantics."""
    (wq, bq, wk, bk, wv, bv, wu, bu, g1, be1,
     wedq, bedq, wedu, bedu, g2, be2,
     wf1, bf1, wf2, bf2, g3, be3) = params

    def ln(t, g, b, eps=1e-5):
        mu = t.mean(-1, keepdims=True)
        var = ((t - mu) ** 2).mean(-1, keepdims=True)
        return (t - mu) / jnp.sqrt(var + eps) * g + b

    q = x @ wq + bq; k = x @ wk + bk; v = x @ wv + bv
    s = jax.nn.softmax(jnp.einsum('bij,bkj->bik', q, k) / dk ** 0.5, axis=-1)
    ua = jnp.einsum('bik,bkj->bij', s, v) @ wu + bu
    n1 = ln(x + ua, g1, be1)
    q2 = n1 @ wedq + bedq
    s2 = jax.nn.softmax(jnp.einsum('bij,bkj->bik', q2, ek) / dk ** 0.5, axis=-1)
    ua2 = jnp.einsum('bik,bkj->bij', s2, ev) @ wedu + bedu
    n2 = ln(ua2 + n1, g2, be2)
    ff = jnp.maximum(n2 @ wf1 + bf1, 0.0) @ wf2 + bf2
    return ln(ff + n2, g3, be3), s2


if __name__ == "__main__":
    # Small shapes consistent with the module's forward():
    #   x: (d, m, dmodel), keys: (d, m, heads*dk), values: (d, m, heads*dv)
    d, m = 2, 8
    dmodel, dq, dk, dv, heads, feedforward = 32, 8, 8, 8, 4, 64

    root = jax.random.PRNGKey(0)
    kx, kk, kv, kp = jax.random.split(root, 4)
    x = jax.random.normal(kx, (d, m, dmodel), jnp.float32)
    enc_keys = jax.random.normal(kk, (d, m, heads * dk), jnp.float32)
    enc_values = jax.random.normal(kv, (d, m, heads * dv), jnp.float32)

    params = init_params(kp, dmodel, dq, dk, dv, heads, feedforward)
    packed = pack_params(params)

    y, scores = transformer_decoder(x, enc_keys, enc_values, packed, dk=dk)
    jax.block_until_ready((y, scores))

    # Pure-JAX reference check (approx reciprocal in softmax -> modest tolerance).
    y_ref, s_ref = ref_forward(x, enc_keys, enc_values, params, dk)
    assert jnp.allclose(y, y_ref, atol=2e-3, rtol=2e-3), "y mismatch"
    assert jnp.allclose(scores, s_ref, atol=2e-3, rtol=2e-3), "scores mismatch"

    print("KERNEL_OK")
</pallas_src>

<mosaic_0001>
module attributes {stable_mosaic.version = 11 : i64} {
  func.func @decoder_kernel(%arg0: i32, %arg1: memref<2x8x32xf32, #tpu.memory_space<vmem>>, %arg2: memref<2x8x32xf32, #tpu.memory_space<vmem>>, %arg3: memref<2x8x32xf32, #tpu.memory_space<vmem>>, %arg4: memref<32x96xf32, #tpu.memory_space<vmem>>, %arg5: memref<1x96xf32, #tpu.memory_space<vmem>>, %arg6: memref<32x32xf32, #tpu.memory_space<vmem>>, %arg7: memref<32x32xf32, #tpu.memory_space<vmem>>, %arg8: memref<1x32xf32, #tpu.memory_space<vmem>>, %arg9: memref<32x32xf32, #tpu.memory_space<vmem>>, %arg10: memref<32x64xf32, #tpu.memory_space<vmem>>, %arg11: memref<1x64xf32, #tpu.memory_space<vmem>>, %arg12: memref<64x32xf32, #tpu.memory_space<vmem>>, %arg13: memref<3x32xf32, #tpu.memory_space<vmem>>, %arg14: memref<3x32xf32, #tpu.memory_space<vmem>>, %arg15: memref<3x32xf32, #tpu.memory_space<vmem>>, %arg16: memref<16x32xf32, #tpu.memory_space<vmem>>, %arg17: memref<16x8xf32, #tpu.memory_space<vmem>>) attributes {dimension_semantics = [#tpu.dimension_semantics<parallel>], iteration_bounds = array<i64: 1>, scalar_prefetch = 0 : i64, scratch_operands = 0 : i64, tpu.core_type = #tpu.core_type<tc>, window_params = [{transform_indices = @transform_0, window_bounds = array<i64: 2, 8, 32>}, {transform_indices = @transform_1, window_bounds = array<i64: 2, 8, 32>}, {transform_indices = @transform_2, window_bounds = array<i64: 2, 8, 32>}, {pipeline_mode = #tpu.pipeline_mode<synchronous>, transform_indices = @transform_3, window_bounds = array<i64: 32, 96>}, {pipeline_mode = #tpu.pipeline_mode<synchronous>, transform_indices = @transform_4, window_bounds = array<i64: 1, 96>}, {pipeline_mode = #tpu.pipeline_mode<synchronous>, transform_indices = @transform_5, window_bounds = array<i64: 32, 32>}, {pipeline_mode = #tpu.pipeline_mode<synchronous>, transform_indices = @transform_6, window_bounds = array<i64: 32, 32>}, {pipeline_mode = #tpu.pipeline_mode<synchronous>, transform_indices = @transform_7, window_bounds = array<i64: 1, 32>}, {pipeline_mode = #tpu.pipeline_mode<synchronous>, transform_indices = @transform_8, window_bounds = array<i64: 32, 32>}, {pipeline_mode = #tpu.pipeline_mode<synchronous>, transform_indices = @transform_9, window_bounds = array<i64: 32, 64>}, {pipeline_mode = #tpu.pipeline_mode<synchronous>, transform_indices = @transform_10, window_bounds = array<i64: 1, 64>}, {pipeline_mode = #tpu.pipeline_mode<synchronous>, transform_indices = @transform_11, window_bounds = array<i64: 64, 32>}, {pipeline_mode = #tpu.pipeline_mode<synchronous>, transform_indices = @transform_12, window_bounds = array<i64: 3, 32>}, {pipeline_mode = #tpu.pipeline_mode<synchronous>, transform_indices = @transform_13, window_bounds = array<i64: 3, 32>}, {pipeline_mode = #tpu.pipeline_mode<synchronous>, transform_indices = @transform_14, window_bounds = array<i64: 3, 32>}, {transform_indices = @transform_15, window_bounds = array<i64: 16, 32>}, {transform_indices = @transform_16, window_bounds = array<i64: 16, 8>}]} {
    %c0 = arith.constant 0 : index
    %c0_0 = arith.constant 0 : index
    %c0_1 = arith.constant 0 : index
    %0 = vector.load %arg1[%c0, %c0_0, %c0_1] : memref<2x8x32xf32, #tpu.memory_space<vmem>>, vector<2x8x32xf32>
    %1 = vector.shape_cast %0 : vector<2x8x32xf32> to vector<16x32xf32>
    %c0_2 = arith.constant 0 : index
    %c0_3 = arith.constant 0 : index
    %2 = vector.load %arg14[%c0_2, %c0_3] : memref<3x32xf32, #tpu.memory_space<vmem>>, vector<3x32xf32>
    %c0_4 = arith.constant 0 : index
    %c0_5 = arith.constant 0 : index
    %3 = vector.load %arg15[%c0_4, %c0_5] : memref<3x32xf32, #tpu.memory_space<vmem>>, vector<3x32xf32>
    %c0_6 = arith.constant 0 : index
    %c0_7 = arith.constant 0 : index
    %4 = vector.load %arg13[%c0_6, %c0_7] : memref<3x32xf32, #tpu.memory_space<vmem>>, vector<3x32xf32>
    %c0_8 = arith.constant 0 : index
    %c0_9 = arith.constant 0 : index
    %5 = vector.load %arg4[%c0_8, %c0_9] : memref<32x96xf32, #tpu.memory_space<vmem>>, vector<32x96xf32>
    %cst = arith.constant dense<0.000000e+00> : vector<16x96xf32>
    %6 = tpu.matmul %1, %5, %cst {dimension_numbers = #tpu.dot_dimension_numbers<[1], [0], [0], [1], [0, 0, 1, 1], [], []>} : vector<16x32xf32>, vector<32x96xf32>, vector<16x96xf32> -> vector<16x96xf32>
    %c0_10 = arith.constant 0 : index
    %c0_11 = arith.constant 0 : index
    %7 = vector.load %arg5[%c0_10, %c0_11] : memref<1x96xf32, #tpu.memory_space<vmem>>, vector<1x96xf32>
    %8 = vector.broadcast %7 : vector<1x96xf32> to vector<16x96xf32>
    %9 = arith.addf %6, %8 : vector<16x96xf32>
    %10 = vector.extract_strided_slice %9 {offsets = [0, 0], sizes = [16, 32], strides = [1, 1]} : vector<16x96xf32> to vector<16x32xf32>
    %cst_12 = arith.constant 0.353553385 : f32
    %11 = vector.broadcast %cst_12 : f32 to vector<16x32xf32>
    %12 = arith.mulf %10, %11 : vector<16x32xf32>
    %13 = vector.extract_strided_slice %9 {offsets = [0, 32], sizes = [16, 32], strides = [1, 1]} : vector<16x96xf32> to vector<16x32xf32>
    %14 = vector.extract_strided_slice %9 {offsets = [0, 64], sizes = [16, 32], strides = [1, 1]} : vector<16x96xf32> to vector<16x32xf32>
    %15 = vector.shape_cast %12 : vector<16x32xf32> to vector<2x8x32xf32>
    %16 = vector.shape_cast %13 : vector<16x32xf32> to vector<2x8x32xf32>
    %17 = vector.shape_cast %14 : vector<16x32xf32> to vector<2x8x32xf32>
    "tpu.trace_start"() <{level = 10 : i32, message = "bqd,bkd->bqk"}> : () -> ()
    %cst_13 = arith.constant dense<0.000000e+00> : vector<2x8x8xf32>
    %18 = tpu.matmul %15, %16, %cst_13 {dimension_numbers = #tpu.dot_dimension_numbers<[2], [2], [1], [1], [0, 0, 0, 1, 1, 1], [0], [0]>} : vector<2x8x32xf32>, vector<2x8x32xf32>, vector<2x8x8xf32> -> vector<2x8x8xf32>
    "tpu.trace_stop"() : () -> ()
    %cst_14 = arith.constant dense<0xFF800000> : vector<2x8xf32>
    %19 = vector.multi_reduction <maximumf>, %18, %cst_14 [2] : vector<2x8x8xf32> to vector<2x8xf32>
    %20 = vector.shape_cast %19 : vector<2x8xf32> to vector<2x8x1xf32>
    %21 = vector.broadcast %20 : vector<2x8x1xf32> to vector<2x8x8xf32>
    %22 = arith.subf %18, %21 : vector<2x8x8xf32>
    %23 = math.exp %22 : vector<2x8x8xf32>
    %cst_15 = arith.constant dense<0.000000e+00> : vector<2x8xf32>
    %24 = vector.multi_reduction <add>, %23, %cst_15 [2] : vector<2x8x8xf32> to vector<2x8xf32>
    %25 = vector.shape_cast %24 : vector<2x8xf32> to vector<2x8x1xf32>
    %26 = tpu.reciprocal %25 {approx = true} : vector<2x8x1xf32> -> vector<2x8x1xf32>
    %27 = vector.broadcast %26 : vector<2x8x1xf32> to vector<2x8x8xf32>
    %28 = arith.mulf %23, %27 : vector<2x8x8xf32>
    "tpu.trace_start"() <{level = 10 : i32, message = "bqk,bkd->bqd"}> : () -> ()
    %cst_16 = arith.constant dense<0.000000e+00> : vector<2x8x32xf32>
    %29 = tpu.matmul %28, %17, %cst_16 {dimension_numbers = #tpu.dot_dimension_numbers<[2], [1], [1], [2], [0, 0, 0, 1, 1, 2], [0], [0]>} : vector<2x8x8xf32>, vector<2x8x32xf32>, vector<2x8x32xf32> -> vector<2x8x32xf32>
    "tpu.trace_stop"() : () -> ()
    %30 = vector.shape_cast %29 : vector<2x8x32xf32> to vector<16x32xf32>
    %c0_17 = arith.constant 0 : index
    %c0_18 = arith.constant 0 : index
    %31 = vector.load %arg6[%c0_17, %c0_18] : memref<32x32xf32, #tpu.memory_space<vmem>>, vector<32x32xf32>
    %cst_19 = arith.constant dense<0.000000e+00> : vector<16x32xf32>
    %32 = tpu.matmul %30, %31, %cst_19 {dimension_numbers = #tpu.dot_dimension_numbers<[1], [0], [0], [1], [0, 0, 1, 1], [], []>} : vector<16x32xf32>, vector<32x32xf32>, vector<16x32xf32> -> vector<16x32xf32>
    %33 = vector.extract_strided_slice %4 {offsets = [0, 0], sizes = [1, 32], strides = [1, 1]} : vector<3x32xf32> to vector<1x32xf32>
    %34 = vector.broadcast %33 : vector<1x32xf32> to vector<16x32xf32>
    %35 = arith.addf %32, %34 : vector<16x32xf32>
    %36 = arith.addf %1, %35 : vector<16x32xf32>
    %37 = vector.extract_strided_slice %2 {offsets = [0, 0], sizes = [1, 32], strides = [1, 1]} : vector<3x32xf32> to vector<1x32xf32>
    %38 = vector.extract_strided_slice %3 {offsets = [0, 0], sizes = [1, 32], strides = [1, 1]} : vector<3x32xf32> to vector<1x32xf32>
    %cst_20 = arith.constant dense<0.000000e+00> : vector<16xf32>
    %39 = vector.multi_reduction <add>, %36, %cst_20 [1] : vector<16x32xf32> to vector<16xf32>
    %40 = vector.shape_cast %39 : vector<16xf32> to vector<16x1xf32>
    %cst_21 = arith.constant 3.200000e+01 : f32
    %41 = vector.broadcast %cst_21 : f32 to vector<16x1xf32>
    %42 = arith.divf %40, %41 : vector<16x1xf32>
    %43 = vector.broadcast %42 : vector<16x1xf32> to vector<16x32xf32>
    %44 = arith.subf %36, %43 : vector<16x32xf32>
    %45 = arith.mulf %44, %44 : vector<16x32xf32>
    %cst_22 = arith.constant dense<0.000000e+00> : vector<16xf32>
    %46 = vector.multi_reduction <add>, %45, %cst_22 [1] : vector<16x32xf32> to vector<16xf32>
    %47 = vector.shape_cast %46 : vector<16xf32> to vector<16x1xf32>
    %cst_23 = arith.constant 3.200000e+01 : f32
    %48 = vector.broadcast %cst_23 : f32 to vector<16x1xf32>
    %49 = arith.divf %47, %48 : vector<16x1xf32>
    %50 = vector.broadcast %42 : vector<16x1xf32> to vector<16x32xf32>
    %51 = arith.subf %36, %50 : vector<16x32xf32>
    %cst_24 = arith.constant 9.99999974E-6 : f32
    %52 = vector.broadcast %cst_24 : f32 to vector<16x1xf32>
    %53 = arith.addf %49, %52 : vector<16x1xf32>
    %54 = math.rsqrt %53 : vector<16x1xf32>
    %55 = vector.broadcast %54 : vector<16x1xf32> to vector<16x32xf32>
    %56 = arith.mulf %51, %55 : vector<16x32xf32>
    %57 = vector.broadcast %37 : vector<1x32xf32> to vector<16x32xf32>
    %58 = arith.mulf %56, %57 : vector<16x32xf32>
    %59 = vector.broadcast %38 : vector<1x32xf32> to vector<16x32xf32>
    %60 = arith.addf %58, %59 : vector<16x32xf32>
    %c0_25 = arith.constant 0 : index
    %c0_26 = arith.constant 0 : index
    %61 = vector.load %arg7[%c0_25, %c0_26] : memref<32x32xf32, #tpu.memory_space<vmem>>, vector<32x32xf32>
    %cst_27 = arith.constant dense<0.000000e+00> : vector<16x32xf32>
    %62 = tpu.matmul %60, %61, %cst_27 {dimension_numbers = #tpu.dot_dimension_numbers<[1], [0], [0], [1], [0, 0, 1, 1], [], []>} : vector<16x32xf32>, vector<32x32xf32>, vector<16x32xf32> -> vector<16x32xf32>
    %c0_28 = arith.constant 0 : index
    %c0_29 = arith.constant 0 : index
    %63 = vector.load %arg8[%c0_28, %c0_29] : memref<1x32xf32, #tpu.memory_space<vmem>>, vector<1x32xf32>
    %64 = vector.broadcast %63 : vector<1x32xf32> to vector<16x32xf32>
    %65 = arith.addf %62, %64 : vector<16x32xf32>
    %cst_30 = arith.constant 0.353553385 : f32
    %66 = vector.broadcast %cst_30 : f32 to vector<16x32xf32>
    %67 = arith.mulf %65, %66 : vector<16x32xf32>
    %68 = vector.shape_cast %67 : vector<16x32xf32> to vector<2x8x32xf32>
    %c0_31 = arith.constant 0 : index
    %c0_32 = arith.constant 0 : index
    %c0_33 = arith.constant 0 : index
    %69 = vector.load %arg2[%c0_31, %c0_32, %c0_33] : memref<2x8x32xf32, #tpu.memory_space<vmem>>, vector<2x8x32xf32>
    "tpu.trace_start"() <{level = 10 : i32, message = "bqd,bkd->bqk"}> : () -> ()
    %cst_34 = arith.constant dense<0.000000e+00> : vector<2x8x8xf32>
    %70 = tpu.matmul %68, %69, %cst_34 {dimension_numbers = #tpu.dot_dimension_numbers<[2], [2], [1], [1], [0, 0, 0, 1, 1, 1], [0], [0]>} : vector<2x8x32xf32>, vector<2x8x32xf32>, vector<2x8x8xf32> -> vector<2x8x8xf32>
    "tpu.trace_stop"() : () -> ()
    %cst_35 = arith.constant dense<0xFF800000> : vector<2x8xf32>
    %71 = vector.multi_reduction <maximumf>, %70, %cst_35 [2] : vector<2x8x8xf32> to vector<2x8xf32>
    %72 = vector.shape_cast %71 : vector<2x8xf32> to vector<2x8x1xf32>
    %73 = vector.broadcast %72 : vector<2x8x1xf32> to vector<2x8x8xf32>
    %74 = arith.subf %70, %73 : vector<2x8x8xf32>
    %75 = math.exp %74 : vector<2x8x8xf32>
    %cst_36 = arith.constant dense<0.000000e+00> : vector<2x8xf32>
    %76 = vector.multi_reduction <add>, %75, %cst_36 [2] : vector<2x8x8xf32> to vector<2x8xf32>
    %77 = vector.shape_cast %76 : vector<2x8xf32> to vector<2x8x1xf32>
    %78 = tpu.reciprocal %77 {approx = true} : vector<2x8x1xf32> -> vector<2x8x1xf32>
    %79 = vector.broadcast %78 : vector<2x8x1xf32> to vector<2x8x8xf32>
    %80 = arith.mulf %75, %79 : vector<2x8x8xf32>
    %c0_37 = arith.constant 0 : index
    %c0_38 = arith.constant 0 : index
    %c0_39 = arith.constant 0 : index
    %81 = vector.load %arg3[%c0_37, %c0_38, %c0_39] : memref<2x8x32xf32, #tpu.memory_space<vmem>>, vector<2x8x32xf32>
    "tpu.trace_start"() <{level = 10 : i32, message = "bqk,bkd->bqd"}> : () -> ()
    %cst_40 = arith.constant dense<0.000000e+00> : vector<2x8x32xf32>
    %82 = tpu.matmul %80, %81, %cst_40 {dimension_numbers = #tpu.dot_dimension_numbers<[2], [1], [1], [2], [0, 0, 0, 1, 1, 2], [0], [0]>} : vector<2x8x8xf32>, vector<2x8x32xf32>, vector<2x8x32xf32> -> vector<2x8x32xf32>
    "tpu.trace_stop"() : () -> ()
    %83 = vector.shape_cast %82 : vector<2x8x32xf32> to vector<16x32xf32>
    %c0_41 = arith.constant 0 : index
    %c0_42 = arith.constant 0 : index
    %84 = vector.load %arg9[%c0_41, %c0_42] : memref<32x32xf32, #tpu.memory_space<vmem>>, vector<32x32xf32>
    %cst_43 = arith.constant dense<0.000000e+00> : vector<16x32xf32>
    %85 = tpu.matmul %83, %84, %cst_43 {dimension_numbers = #tpu.dot_dimension_numbers<[1], [0], [0], [1], [0, 0, 1, 1], [], []>} : vector<16x32xf32>, vector<32x32xf32>, vector<16x32xf32> -> vector<16x32xf32>
    %86 = vector.extract_strided_slice %4 {offsets = [1, 0], sizes = [1, 32], strides = [1, 1]} : vector<3x32xf32> to vector<1x32xf32>
    %87 = vector.broadcast %86 : vector<1x32xf32> to vector<16x32xf32>
    %88 = arith.addf %85, %87 : vector<16x32xf32>
    %89 = arith.addf %88, %60 : vector<16x32xf32>
    %90 = vector.extract_strided_slice %2 {offsets = [1, 0], sizes = [1, 32], strides = [1, 1]} : vector<3x32xf32> to vector<1x32xf32>
    %91 = vector.extract_strided_slice %3 {offsets = [1, 0], sizes = [1, 32], strides = [1, 1]} : vector<3x32xf32> to vector<1x32xf32>
    %cst_44 = arith.constant dense<0.000000e+00> : vector<16xf32>
    %92 = vector.multi_reduction <add>, %89, %cst_44 [1] : vector<16x32xf32> to vector<16xf32>
    %93 = vector.shape_cast %92 : vector<16xf32> to vector<16x1xf32>
    %cst_45 = arith.constant 3.200000e+01 : f32
    %94 = vector.broadcast %cst_45 : f32 to vector<16x1xf32>
    %95 = arith.divf %93, %94 : vector<16x1xf32>
    %96 = vector.broadcast %95 : vector<16x1xf32> to vector<16x32xf32>
    %97 = arith.subf %89, %96 : vector<16x32xf32>
    %98 = arith.mulf %97, %97 : vector<16x32xf32>
    %cst_46 = arith.constant dense<0.000000e+00> : vector<16xf32>
    %99 = vector.multi_reduction <add>, %98, %cst_46 [1] : vector<16x32xf32> to vector<16xf32>
    %100 = vector.shape_cast %99 : vector<16xf32> to vector<16x1xf32>
    %cst_47 = arith.constant 3.200000e+01 : f32
    %101 = vector.broadcast %cst_47 : f32 to vector<16x1xf32>
    %102 = arith.divf %100, %101 : vector<16x1xf32>
    %103 = vector.broadcast %95 : vector<16x1xf32> to vector<16x32xf32>
    %104 = arith.subf %89, %103 : vector<16x32xf32>
    %cst_48 = arith.constant 9.99999974E-6 : f32
    %105 = vector.broadcast %cst_48 : f32 to vector<16x1xf32>
    %106 = arith.addf %102, %105 : vector<16x1xf32>
    %107 = math.rsqrt %106 : vector<16x1xf32>
    %108 = vector.broadcast %107 : vector<16x1xf32> to vector<16x32xf32>
    %109 = arith.mulf %104, %108 : vector<16x32xf32>
    %110 = vector.broadcast %90 : vector<1x32xf32> to vector<16x32xf32>
    %111 = arith.mulf %109, %110 : vector<16x32xf32>
    %112 = vector.broadcast %91 : vector<1x32xf32> to vector<16x32xf32>
    %113 = arith.addf %111, %112 : vector<16x32xf32>
    %c0_49 = arith.constant 0 : index
    %c0_50 = arith.constant 0 : index
    %114 = vector.load %arg10[%c0_49, %c0_50] : memref<32x64xf32, #tpu.memory_space<vmem>>, vector<32x64xf32>
    %cst_51 = arith.constant dense<0.000000e+00> : vector<16x64xf32>
    %115 = tpu.matmul %113, %114, %cst_51 {dimension_numbers = #tpu.dot_dimension_numbers<[1], [0], [0], [1], [0, 0, 1, 1], [], []>} : vector<16x32xf32>, vector<32x64xf32>, vector<16x64xf32> -> vector<16x64xf32>
    %c0_52 = arith.constant 0 : index
    %c0_53 = arith.constant 0 : index
    %116 = vector.load %arg11[%c0_52, %c0_53] : memref<1x64xf32, #tpu.memory_space<vmem>>, vector<1x64xf32>
    %117 = vector.broadcast %116 : vector<1x64xf32> to vector<16x64xf32>
    %118 = arith.addf %115, %117 : vector<16x64xf32>
    %cst_54 = arith.constant 0.000000e+00 : f32
    %119 = vector.broadcast %cst_54 : f32 to vector<16x64xf32>
    %120 = arith.maximumf %118, %119 : vector<16x64xf32>
    %c0_55 = arith.constant 0 : index
    %c0_56 = arith.constant 0 : index
    %121 = vector.load %arg12[%c0_55, %c0_56] : memref<64x32xf32, #tpu.memory_space<vmem>>, vector<64x32xf32>
    %cst_57 = arith.constant dense<0.000000e+00> : vector<16x32xf32>
    %122 = tpu.matmul %120, %121, %cst_57 {dimension_numbers = #tpu.dot_dimension_numbers<[1], [0], [0], [1], [0, 0, 1, 1], [], []>} : vector<16x64xf32>, vector<64x32xf32>, vector<16x32xf32> -> vector<16x32xf32>
    %123 = vector.extract_strided_slice %4 {offsets = [2, 0], sizes = [1, 32], strides = [1, 1]} : vector<3x32xf32> to vector<1x32xf32>
    %124 = vector.broadcast %123 : vector<1x32xf32> to vector<16x32xf32>
    %125 = arith.addf %122, %124 : vector<16x32xf32>
    %126 = arith.addf %125, %113 : vector<16x32xf32>
    %127 = vector.extract_strided_slice %2 {offsets = [2, 0], sizes = [1, 32], strides = [1, 1]} : vector<3x32xf32> to vector<1x32xf32>
    %128 = vector.extract_strided_slice %3 {offsets = [2, 0], sizes = [1, 32], strides = [1, 1]} : vector<3x32xf32> to vector<1x32xf32>
    %cst_58 = arith.constant dense<0.000000e+00> : vector<16xf32>
    %129 = vector.multi_reduction <add>, %126, %cst_58 [1] : vector<16x32xf32> to vector<16xf32>
    %130 = vector.shape_cast %129 : vector<16xf32> to vector<16x1xf32>
    %cst_59 = arith.constant 3.200000e+01 : f32
    %131 = vector.broadcast %cst_59 : f32 to vector<16x1xf32>
    %132 = arith.divf %130, %131 : vector<16x1xf32>
    %133 = vector.broadcast %132 : vector<16x1xf32> to vector<16x32xf32>
    %134 = arith.subf %126, %133 : vector<16x32xf32>
    %135 = arith.mulf %134, %134 : vector<16x32xf32>
    %cst_60 = arith.constant dense<0.000000e+00> : vector<16xf32>
    %136 = vector.multi_reduction <add>, %135, %cst_60 [1] : vector<16x32xf32> to vector<16xf32>
    %137 = vector.shape_cast %136 : vector<16xf32> to vector<16x1xf32>
    %cst_61 = arith.constant 3.200000e+01 : f32
    %138 = vector.broadcast %cst_61 : f32 to vector<16x1xf32>
    %139 = arith.divf %137, %138 : vector<16x1xf32>
    %140 = vector.broadcast %132 : vector<16x1xf32> to vector<16x32xf32>
    %141 = arith.subf %126, %140 : vector<16x32xf32>
    %cst_62 = arith.constant 9.99999974E-6 : f32
    %142 = vector.broadcast %cst_62 : f32 to vector<16x1xf32>
    %143 = arith.addf %139, %142 : vector<16x1xf32>
    %144 = math.rsqrt %143 : vector<16x1xf32>
    %145 = vector.broadcast %144 : vector<16x1xf32> to vector<16x32xf32>
    %146 = arith.mulf %141, %145 : vector<16x32xf32>
    %147 = vector.broadcast %127 : vector<1x32xf32> to vector<16x32xf32>
    %148 = arith.mulf %146, %147 : vector<16x32xf32>
    %149 = vector.broadcast %128 : vector<1x32xf32> to vector<16x32xf32>
    %150 = arith.addf %148, %149 : vector<16x32xf32>
    %c0_63 = arith.constant 0 : index
    %c0_64 = arith.constant 0 : index
    %151 = vector.load %arg16[%c0_63, %c0_64] : memref<16x32xf32, #tpu.memory_space<vmem>>, vector<16x32xf32>
    tpu.vector_store %arg16[%c0_63, %c0_64], %150 {strides = array<i32>} : memref<16x32xf32, #tpu.memory_space<vmem>>, vector<16x32xf32>,
    %152 = vector.shape_cast %80 : vector<2x8x8xf32> to vector<16x8xf32>
    %c0_65 = arith.constant 0 : index
    %c0_66 = arith.constant 0 : index
    %153 = vector.load %arg17[%c0_65, %c0_66] : memref<16x8xf32, #tpu.memory_space<vmem>>, vector<16x8xf32>
    tpu.vector_store %arg17[%c0_65, %c0_66], %152 {strides = array<i32>} : memref<16x8xf32, #tpu.memory_space<vmem>>, vector<16x8xf32>,
    return
  }
  func.func @transform_0(%arg0: i32) -> (i32, i32, i32) {
    %c0_i32 = arith.constant 0 : i32
    %c0_i32_0 = arith.constant 0 : i32
    %c0_i32_1 = arith.constant 0 : i32
    return %arg0, %c0_i32, %c0_i32_0 : i32, i32, i32
  }
  func.func @transform_1(%arg0: i32) -> (i32, i32, i32) {
    %c0_i32 = arith.constant 0 : i32
    %c0_i32_0 = arith.constant 0 : i32
    %c0_i32_1 = arith.constant 0 : i32
    return %arg0, %c0_i32, %c0_i32_0 : i32, i32, i32
  }
  func.func @transform_2(%arg0: i32) -> (i32, i32, i32) {
    %c0_i32 = arith.constant 0 : i32
    %c0_i32_0 = arith.constant 0 : i32
    %c0_i32_1 = arith.constant 0 : i32
    return %arg0, %c0_i32, %c0_i32_0 : i32, i32, i32
  }
  func.func @transform_3(%arg0: i32) -> (i32, i32) {
    %c0_i32 = arith.constant 0 : i32
    %c0_i32_0 = arith.constant 0 : i32
    %c0_i32_1 = arith.constant 0 : i32
    return %c0_i32, %c0_i32_0 : i32, i32
  }
  func.func @transform_4(%arg0: i32) -> (i32, i32) {
    %c0_i32 = arith.constant 0 : i32
    %c0_i32_0 = arith.constant 0 : i32
    %c0_i32_1 = arith.constant 0 : i32
    return %c0_i32, %c0_i32_0 : i32, i32
  }
  func.func @transform_5(%arg0: i32) -> (i32, i32) {
    %c0_i32 = arith.constant 0 : i32
    %c0_i32_0 = arith.constant 0 : i32
    %c0_i32_1 = arith.constant 0 : i32
    return %c0_i32, %c0_i32_0 : i32, i32
  }
  func.func @transform_6(%arg0: i32) -> (i32, i32) {
    %c0_i32 = arith.constant 0 : i32
    %c0_i32_0 = arith.constant 0 : i32
    %c0_i32_1 = arith.constant 0 : i32
    return %c0_i32, %c0_i32_0 : i32, i32
  }
  func.func @transform_7(%arg0: i32) -> (i32, i32) {
    %c0_i32 = arith.constant 0 : i32
    %c0_i32_0 = arith.constant 0 : i32
    %c0_i32_1 = arith.constant 0 : i32
    return %c0_i32, %c0_i32_0 : i32, i32
  }
  func.func @transform_8(%arg0: i32) -> (i32, i32) {
    %c0_i32 = arith.constant 0 : i32
    %c0_i32_0 = arith.constant 0 : i32
    %c0_i32_1 = arith.constant 0 : i32
    return %c0_i32, %c0_i32_0 : i32, i32
  }
  func.func @transform_9(%arg0: i32) -> (i32, i32) {
    %c0_i32 = arith.constant 0 : i32
    %c0_i32_0 = arith.constant 0 : i32
    %c0_i32_1 = arith.constant 0 : i32
    return %c0_i32, %c0_i32_0 : i32, i32
  }
  func.func @transform_10(%arg0: i32) -> (i32, i32) {
    %c0_i32 = arith.constant 0 : i32
    %c0_i32_0 = arith.constant 0 : i32
    %c0_i32_1 = arith.constant 0 : i32
    return %c0_i32, %c0_i32_0 : i32, i32
  }
  func.func @transform_11(%arg0: i32) -> (i32, i32) {
    %c0_i32 = arith.constant 0 : i32
    %c0_i32_0 = arith.constant 0 : i32
    %c0_i32_1 = arith.constant 0 : i32
    return %c0_i32, %c0_i32_0 : i32, i32
  }
  func.func @transform_12(%arg0: i32) -> (i32, i32) {
    %c0_i32 = arith.constant 0 : i32
    %c0_i32_0 = arith.constant 0 : i32
    %c0_i32_1 = arith.constant 0 : i32
    return %c0_i32, %c0_i32_0 : i32, i32
  }
  func.func @transform_13(%arg0: i32) -> (i32, i32) {
    %c0_i32 = arith.constant 0 : i32
    %c0_i32_0 = arith.constant 0 : i32
    %c0_i32_1 = arith.constant 0 : i32
    return %c0_i32, %c0_i32_0 : i32, i32
  }
  func.func @transform_14(%arg0: i32) -> (i32, i32) {
    %c0_i32 = arith.constant 0 : i32
    %c0_i32_0 = arith.constant 0 : i32
    %c0_i32_1 = arith.constant 0 : i32
    return %c0_i32, %c0_i32_0 : i32, i32
  }
  func.func @transform_15(%arg0: i32) -> (i32, i32) {
    %c0_i32 = arith.constant 0 : i32
    %c0_i32_0 = arith.constant 0 : i32
    return %arg0, %c0_i32 : i32, i32
  }
  func.func @transform_16(%arg0: i32) -> (i32, i32) {
    %c0_i32 = arith.constant 0 : i32
    %c0_i32_0 = arith.constant 0 : i32
    return %arg0, %c0_i32 : i32, i32
  }
}

</mosaic_0001>

<llo_original>
// kernel: tpu_custom_call.1
$region0: #{tpu_custom_call.1}
  #allocation0 [shape = 'u32[]', space=smem, size = 0x4, offset = 0x4, fixed_abs, tag = 'smem constant byte address 0x4 - core index']
  #allocation1 [shape = 'u32[144,128]{1,0:T(1,128)}', space=vmem, size = 0x12000, scoped, tag = 'internal scratch']
  %s0 = inlined_call_operand.hbm [shape: f32[2,8,32], index: 0, kind: input, shape index: {}]
  %s1 = inlined_call_operand.hbm [shape: f32[2,8,32], index: 1, kind: input, shape index: {}]
  %s2 = inlined_call_operand.hbm [shape: f32[2,8,32], index: 2, kind: input, shape index: {}]
  %s3 = inlined_call_operand.vmem [shape: f32[32,96], index: 3, kind: input, shape index: {}]
  %s4 = inlined_call_operand.vmem [shape: f32[1,96], index: 4, kind: input, shape index: {}]
  %s5 = inlined_call_operand.vmem [shape: f32[32,32], index: 5, kind: input, shape index: {}]
  %s6 = inlined_call_operand.vmem [shape: f32[32,32], index: 6, kind: input, shape index: {}]
  %s7 = inlined_call_operand.hbm [shape: f32[1,32], index: 7, kind: input, shape index: {}]
  %s8 = inlined_call_operand.hbm [shape: f32[32,32], index: 8, kind: input, shape index: {}]
  %s9 = inlined_call_operand.hbm [shape: f32[32,64], index: 9, kind: input, shape index: {}]
  %s10 = inlined_call_operand.hbm [shape: f32[1,64], index: 10, kind: input, shape index: {}]
  %s11 = inlined_call_operand.vmem [shape: f32[64,32], index: 11, kind: input, shape index: {}]
  %s12 = inlined_call_operand.vmem [shape: f32[3,32], index: 12, kind: input, shape index: {}]
  %s13 = inlined_call_operand.vmem [shape: f32[3,32], index: 13, kind: input, shape index: {}]
  %s14 = inlined_call_operand.vmem [shape: f32[3,32], index: 14, kind: input, shape index: {}]
  %s15 = inlined_call_operand.hbm [shape: f32[16,32], index: 15, kind: output, shape index: {0}]
  %s16 = inlined_call_operand.vmem [shape: f32[16,8], index: 16, kind: output, shape index: {1}]
  %17 = xla_tuple %s15, %s16
  %s18 = sld [smem:[#allocation0]]
  $region106: #{tpu_custom_call.1} parent=0
    _
  %s20 = ssub.s32 1, %s18
  %s21 = scalar_select 0, %s20, %s18
  $region1: #{tpu_custom_call.1} parent=0
    #allocation2 [shape = 'u8[8192]{0}', space=vmem, size = 0x2000, scoped, tag = 'input window, operand 0, single buffered']
    #allocation3 [shape = 's32[1]{0}', space=sflag, size = 0x4, scoped, tag = 'scoped memory for tpu_custom_call.1']
    #allocation4 [shape = 's32[1]{0}', space=sflag, size = 0x4, scoped, tag = 'scoped memory for tpu_custom_call.1']
    #allocation5 [shape = 'u8[8192]{0}', space=vmem, size = 0x2000, scoped, tag = 'input window, operand 1, single buffered']
    #allocation6 [shape = 's32[1]{0}', space=sflag, size = 0x4, scoped, tag = 'scoped memory for tpu_custom_call.1']
    #allocation7 [shape = 'u8[8192]{0}', space=vmem, size = 0x2000, scoped, tag = 'input window, operand 2, single buffered']
    #allocation8 [shape = 'u8[512]{0}', space=vmem, size = 0x400, scoped, tag = 'input window, operand 7, single buffered']
    #allocation9 [shape = 's32[1]{0}', space=sflag, size = 0x4, scoped, tag = 'scoped memory for tpu_custom_call.1']
    #allocation10 [shape = 'u8[16384]{0}', space=vmem, size = 0x4000, scoped, tag = 'input window, operand 8, single buffered']
    #allocation11 [shape = 'u8[16384]{0}', space=vmem, size = 0x4000, scoped, tag = 'input window, operand 9, single buffered']
    #allocation12 [shape = 's32[1]{0}', space=sflag, size = 0x4, scoped, tag = 'scoped memory for tpu_custom_call.1']
    #allocation13 [shape = 'u8[512]{0}', space=vmem, size = 0x400, scoped, tag = 'input window, operand 10, single buffered']
    #allocation14 [shape = 'u8[8192]{0}', space=vmem, size = 0x2000, scoped, tag = 'output window, operand 0, single buffered']
    %22 = vsyncpa [#allocation3], 0
    %23 = vsyncpa [#allocation6], 0
    %24 = vsyncpa [#allocation9], 0
    %25 = vsyncpa [#allocation12], 0
    %26 = vsyncpa [#allocation4], 0
    // Predicated region
    $region2: #{tpu_custom_call.1} parent=1 // pred_check
      _
    $region3: #{tpu_custom_call.1} parent=1 // pred_check_branch
      %28 = sbr.rel (0) target = $region5
    $region4: #{tpu_custom_call.1} parent=1 // pred_region
      %s30 = ssub.s32 256, 256
      %31 = vsyncadd [#allocation3], %s30
      %s32 = sshll.u32 [#allocation2], 4
      %s33 = int_to_ptr.vmem [resolvable:$true] %s32
      %38 = dma.hbm_to_vmem [thread:$0]  %s0, 256, %s33, [#allocation3], 128, 128, 8
    $region5: #{tpu_custom_call.1} parent=1 // pred_fallthru
      _
    // Predicated region
    $region6: #{tpu_custom_call.1} parent=1 // pred_check
      _
    $region7: #{tpu_custom_call.1} parent=1 // pred_check_branch
      %40 = sbr.rel (0) target = $region9
    $region8: #{tpu_custom_call.1} parent=1 // pred_region
      %s42 = ssub.s32 256, 256
      %43 = vsyncadd [#allocation6], %s42
      %s44 = sshll.u32 [#allocation5], 4
      %s45 = int_to_ptr.vmem [resolvable:$true] %s44
      %50 = dma.hbm_to_vmem [thread:$0]  %s1, 256, %s45, [#allocation6], 128, 128, 8
    $region9: #{tpu_custom_call.1} parent=1 // pred_fallthru
      _
    // Predicated region
    $region10: #{tpu_custom_call.1} parent=1 // pred_check
      _
    $region11: #{tpu_custom_call.1} parent=1 // pred_check_branch
      %52 = sbr.rel (0) target = $region13
    $region12: #{tpu_custom_call.1} parent=1 // pred_region
      %s54 = ssub.s32 256, 256
      %55 = vsyncadd [#allocation6], %s54
      %s56 = sshll.u32 [#allocation7], 4
      %s57 = int_to_ptr.vmem [resolvable:$true] %s56
      %62 = dma.hbm_to_vmem [thread:$0]  %s2, 256, %s57, [#allocation6], 128, 128, 8
    $region13: #{tpu_custom_call.1} parent=1 // pred_fallthru
      _
    // Predicated region
    $region14: #{tpu_custom_call.1} parent=1 // pred_check
      _
    $region15: #{tpu_custom_call.1} parent=1 // pred_check_branch
      %64 = sbr.rel (0) target = $region17
    $region16: #{tpu_custom_call.1} parent=1 // pred_region
      _
    $region17: #{tpu_custom_call.1} parent=1 // pred_fallthru
      _
    // Predicated region
    $region18: #{tpu_custom_call.1} parent=1 // pred_check
      _
    $region19: #{tpu_custom_call.1} parent=1 // pred_check_branch
      %66 = sbr.rel (0) target = $region21
    $region20: #{tpu_custom_call.1} parent=1 // pred_region
      _
    $region21: #{tpu_custom_call.1} parent=1 // pred_fallthru
      _
    // Predicated region
    $region22: #{tpu_custom_call.1} parent=1 // pred_check
      _
    $region23: #{tpu_custom_call.1} parent=1 // pred_check_branch
      %68 = sbr.rel (0) target = $region25
    $region24: #{tpu_custom_call.1} parent=1 // pred_region
      _
    $region25: #{tpu_custom_call.1} parent=1 // pred_fallthru
      _
    // Predicated region
    $region26: #{tpu_custom_call.1} parent=1 // pred_check
      _
    $region27: #{tpu_custom_call.1} parent=1 // pred_check_branch
      %70 = sbr.rel (0) target = $region29
    $region28: #{tpu_custom_call.1} parent=1 // pred_region
      _
    $region29: #{tpu_custom_call.1} parent=1 // pred_fallthru
      _
    // Predicated region
    $region30: #{tpu_custom_call.1} parent=1 // pred_check
      _
    $region31: #{tpu_custom_call.1} parent=1 // pred_check_branch
      %72 = sbr.rel (0) target = $region33
    $region32: #{tpu_custom_call.1} parent=1 // pred_region
      %s74 = ssub.s32 16, 16
      %75 = vsyncadd [#allocation9], %s74
      %s77 = sshll.u32 [#allocation8], 4
      %s78 = int_to_ptr.vmem [resolvable:$true] %s77
      %80 = dma.hbm_to_vmem [thread:$0]  %s7, 16, %s78, [#allocation9]
    $region33: #{tpu_custom_call.1} parent=1 // pred_fallthru
      _
    // Predicated region
    $region34: #{tpu_custom_call.1} parent=1 // pred_check
      _
    $region35: #{tpu_custom_call.1} parent=1 // pred_check_branch
      %82 = sbr.rel (0) target = $region37
    $region36: #{tpu_custom_call.1} parent=1 // pred_region
      %s84 = ssub.s32 512, 512
      %85 = vsyncadd [#allocation9], %s84
      %s86 = sshll.u32 [#allocation10], 4
      %s87 = int_to_ptr.vmem [resolvable:$true] %s86
      %92 = dma.hbm_to_vmem [thread:$0]  %s8, 512, %s87, [#allocation9], 128, 128, 8
    $region37: #{tpu_custom_call.1} parent=1 // pred_fallthru
      _
    // Predicated region
    $region38: #{tpu_custom_call.1} parent=1 // pred_check
      _
    $region39: #{tpu_custom_call.1} parent=1 // pred_check_branch
      %94 = sbr.rel (0) target = $region41
    $region40: #{tpu_custom_call.1} parent=1 // pred_region
      %s96 = ssub.s32 512, 512
      %97 = vsyncadd [#allocation12], %s96
      %s98 = sshll.u32 [#allocation11], 4
      %s99 = int_to_ptr.vmem [resolvable:$true] %s98
      %104 = dma.hbm_to_vmem [thread:$0]  %s9, 512, %s99, [#allocation12], 128, 128, 8
    $region41: #{tpu_custom_call.1} parent=1 // pred_fallthru
      _
    // Predicated region
    $region42: #{tpu_custom_call.1} parent=1 // pred_check
      _
    $region43: #{tpu_custom_call.1} parent=1 // pred_check_branch
      %106 = sbr.rel (0) target = $region45
    $region44: #{tpu_custom_call.1} parent=1 // pred_region
      %s108 = ssub.s32 16, 16
      %109 = vsyncadd [#allocation12], %s108
      %s111 = sshll.u32 [#allocation13], 4
      %s112 = int_to_ptr.vmem [resolvable:$true] %s111
      %114 = dma.hbm_to_vmem [thread:$0]  %s10, 16, %s112, [#allocation12]
    $region45: #{tpu_custom_call.1} parent=1 // pred_fallthru
      _
    // Predicated region
    $region46: #{tpu_custom_call.1} parent=1 // pred_check
      _
    $region47: #{tpu_custom_call.1} parent=1 // pred_check_branch
      %116 = sbr.rel (0) target = $region49
    $region48: #{tpu_custom_call.1} parent=1 // pred_region
      _
    $region49: #{tpu_custom_call.1} parent=1 // pred_fallthru
      _
    // Predicated region
    $region50: #{tpu_custom_call.1} parent=1 // pred_check
      _
    $region51: #{tpu_custom_call.1} parent=1 // pred_check_branch
      %118 = sbr.rel (0) target = $region53
    $region52: #{tpu_custom_call.1} parent=1 // pred_region
      _
    $region53: #{tpu_custom_call.1} parent=1 // pred_fallthru
      _
    // Predicated region
    $region54: #{tpu_custom_call.1} parent=1 // pred_check
      _
    $region55: #{tpu_custom_call.1} parent=1 // pred_check_branch
      %120 = sbr.rel (0) target = $region57
    $region56: #{tpu_custom_call.1} parent=1 // pred_region
      _
    $region57: #{tpu_custom_call.1} parent=1 // pred_fallthru
      _
    // Predicated region
    $region58: #{tpu_custom_call.1} parent=1 // pred_check
      _
    $region59: #{tpu_custom_call.1} parent=1 // pred_check_branch
      %122 = sbr.rel (0) target = $region61
    $region60: #{tpu_custom_call.1} parent=1 // pred_region
      _
    $region61: #{tpu_custom_call.1} parent=1 // pred_fallthru
      _
    // Predicated region
    $region62: #{tpu_custom_call.1} parent=1 // pred_check
      _
    $region63: #{tpu_custom_call.1} parent=1 // pred_check_branch
      %124 = sbr.rel (0) target = $region65
    $region64: #{tpu_custom_call.1} parent=1 // pred_region
      %125 = dma.done [#allocation3], 256
    $region65: #{tpu_custom_call.1} parent=1 // pred_fallthru
      _
    // Predicated region
    $region66: #{tpu_custom_call.1} parent=1 // pred_check
      _
    $region67: #{tpu_custom_call.1} parent=1 // pred_check_branch
      %127 = sbr.rel (0) target = $region69
    $region68: #{tpu_custom_call.1} parent=1 // pred_region
      %128 = dma.done [#allocation6], 256
    $region69: #{tpu_custom_call.1} parent=1 // pred_fallthru
      _
    // Predicated region
    $region70: #{tpu_custom_call.1} parent=1 // pred_check
      _
    $region71: #{tpu_custom_call.1} parent=1 // pred_check_branch
      %130 = sbr.rel (0) target = $region73
    $region72: #{tpu_custom_call.1} parent=1 // pred_region
      %131 = dma.done [#allocation6], 256
    $region73: #{tpu_custom_call.1} parent=1 // pred_fallthru
      _
    // Predicated region
    $region74: #{tpu_custom_call.1} parent=1 // pred_check
      _
    $region75: #{tpu_custom_call.1} parent=1 // pred_check_branch
      %133 = sbr.rel (0) target = $region77
    $region76: #{tpu_custom_call.1} parent=1 // pred_region
      %134 = dma.done [#allocation9], 16
    $region77: #{tpu_custom_call.1} parent=1 // pred_fallthru
      _
    // Predicated region
    $region78: #{tpu_custom_call.1} parent=1 // pred_check
      _
    $region79: #{tpu_custom_call.1} parent=1 // pred_check_branch
      %136 = sbr.rel (0) target = $region81
    $region80: #{tpu_custom_call.1} parent=1 // pred_region
      %137 = dma.done [#allocation9], 512
    $region81: #{tpu_custom_call.1} parent=1 // pred_fallthru
      _
    // Predicated region
    $region82: #{tpu_custom_call.1} parent=1 // pred_check
      _
    $region83: #{tpu_custom_call.1} parent=1 // pred_check_branch
      %139 = sbr.rel (0) target = $region85
    $region84: #{tpu_custom_call.1} parent=1 // pred_region
      %140 = dma.done [#allocation12], 512
    $region85: #{tpu_custom_call.1} parent=1 // pred_fallthru
      _
    // Predicated region
    $region86: #{tpu_custom_call.1} parent=1 // pred_check
      _
    $region87: #{tpu_custom_call.1} parent=1 // pred_check_branch
      %142 = sbr.rel (0) target = $region89
    $region88: #{tpu_custom_call.1} parent=1 // pred_region
      %143 = dma.done [#allocation12], 16
    $region89: #{tpu_custom_call.1} parent=1 // pred_fallthru
      _
    %v144 = vld [vmem:[#allocation2] sm:$0xff]
    %v145 = vld [vmem:[#allocation2 + $0x8] sm:$0xff]
    %v146 = vld [vmem:[%s13] sm:$0x7]
    %v147 = vld [vmem:[%s14] sm:$0x7]
    %v148 = vld [vmem:[%s12] sm:$0x7]
    %v149 = vld [vmem:[%s3] sm:$0xff]
    %v150 = vld [vmem:[%s3 + $0x8] sm:$0xff]
    %v151 = vld [vmem:[%s3 + $0x10] sm:$0xff]
    %v152 = vld [vmem:[%s3 + $0x18] sm:$0xff]
    %v153 = vld [vmem:[%s4] sm:$0x1]
    %v155 = vlaneseq
    %v156 = vshrl.u32 %v155, 7
    %v157 = vsub.s32 0, %v156
    %v158 = vrot.slane %v153, %v157
    %vm160 = vcmask 261120
    %v162 = vsel %vm160, %v144, 0
    %v165 = vsel %vm160, %v145, 0
    %167 = vmatprep.subr.mxu0 0.0
    %168 = vmatpush1.msra.mxu0 %v149
    %169 = vmatprep.subr.mxu0 0.0
    %170 = vmatpush1.msra.mxu0 %v150
    %171 = vmatprep.subr.mxu0 0.0
    %172 = vmatpush1.msra.mxu0 %v151
    %173 = vmatprep.subr.mxu0 0.0
    %174 = vmatpush1.msra.mxu0 %v152
    %175 = vmatprep.subr.mxu0 0.0
    %176 = vmatpush1.msra.mxu0 0.0
    %177 = vmatprep.subr.mxu0 0.0
    %178 = vmatpush1.msra.mxu0 0.0
    %179 = vmatprep.subr.mxu0 0.0
    %180 = vmatpush1.msra.mxu0 0.0
    %181 = vmatprep.subr.mxu0 0.0
    %182 = vmatpush1.msra.mxu0 0.0
    %183 = vmatprep.subr.mxu0 0.0
    %184 = vmatpush1.msra.mxu0 0.0
    %185 = vmatprep.subr.mxu0 0.0
    %186 = vmatpush1.msra.mxu0 0.0
    %187 = vmatprep.subr.mxu0 0.0
    %188 = vmatpush1.msra.mxu0 0.0
    %189 = vmatprep.subr.mxu0 0.0
    %190 = vmatpush1.msra.mxu0 0.0
    %191 = vmatprep.subr.mxu0 0.0
    %192 = vmatpush1.msra.mxu0 0.0
    %193 = vmatprep.subr.mxu0 0.0
    %194 = vmatpush1.msra.mxu0 0.0
    %195 = vmatprep.subr.mxu0 0.0
    %196 = vmatpush1.msra.mxu0 0.0
    %197 = vmatprep.subr.mxu0 0.0
    %198 = vmatpush1.msra.mxu0 0.0
    %199 = vmatprep.subr.mxu0 0.0
    %200 = vmatpush1.msra.mxu0 0.0
    %201 = vmatprep.subr.mxu0 0.0
    %202 = vmatpush1.msra.mxu0 0.0
    %203 = vmatprep.subr.mxu0 0.0
    %204 = vmatpush1.msra.mxu0 0.0
    %205 = vmatprep.subr.mxu0 0.0
    %206 = vmatpush1.msra.mxu0 0.0
    %207 = vmatprep.subr.mxu0 0.0
    %208 = vmatpush1.msra.mxu0 0.0
    %209 = vmatprep.subr.mxu0 0.0
    %210 = vmatpush1.msra.mxu0 0.0
    %211 = vmatprep.subr.mxu0 0.0
    %212 = vmatpush1.msra.mxu0 0.0
    %213 = vmatprep.subr.mxu0 0.0
    %214 = vmatpush1.msra.mxu0 0.0
    %215 = vmatprep.subr.mxu0 0.0
    %216 = vmatpush1.msra.mxu0 0.0
    %217 = vmatprep.subr.mxu0 0.0
    %218 = vmatpush1.msra.mxu0 0.0
    %219 = vmatprep.subr.mxu0 0.0
    %220 = vmatpush1.msra.mxu0 0.0
    %221 = vmatprep.subr.mxu0 0.0
    %222 = vmatpush1.msra.mxu0 0.0
    %223 = vmatprep.subr.mxu0 0.0
    %224 = vmatpush1.msra.mxu0 0.0
    %225 = vmatprep.subr.mxu0 0.0
    %226 = vmatpush1.msra.mxu0 0.0
    %227 = vmatprep.subr.mxu0 0.0
    %228 = vmatpush1.msra.mxu0 0.0
    %229 = vmatprep.subr.mxu0 0.0
    %230 = vmatpush1.msra.mxu0 0.0
    %231 = vmatprep.mubr.f32.mxu0 0.0
    %232 = vmatmul.mubr.f32.gmra.mrb[0].mxu0 %v162
    %v233 = vpop.f32.mrb[0].mxu0
    %v234 = vadd.f32 %v158, %v233
    %v235 = vpop.f32.mrb[0].mxu0
    %236 = vmatprep.mubr.f32.mxu0 0.0
    %237 = vmatmul.mubr.f32.gmra.mrb[0].mxu0 %v165
    %v238 = vpop.f32.mrb[0].mxu0
    %v239 = vadd.f32 %v158, %v238
    %v240 = vpop.f32.mrb[0].mxu0
    %241 = vdwg.mxu0
    %v242 = vmul.f32 %v234, 0.35355338
    %v243 = vmul.f32 %v239, 0.35355338
    %245 = vrot.lane.b32.xlu0 %v234, 96
    %v246 = vpop.permute.xlu0 %245
    %v248 = vsel %vm160, %v242, 0
    %v250 = vsel %vm160, %v246, 0
    %252 = vmatprep.subr.mxu0 0.0
    %253 = vmatpush1.xpose.msra.mxu0 %v250
    %254 = vmatprep.subr.mxu0 0.0
    %255 = vmatpush1.xpose.msra.mxu0 0.0
    %256 = vmatprep.subr.mxu0 0.0
    %257 = vmatpush1.xpose.msra.mxu0 0.0
    %258 = vmatprep.subr.mxu0 0.0
    %259 = vmatpush1.xpose.msra.mxu0 0.0
    %260 = vmatprep.subr.mxu0 0.0
    %261 = vmatpush1.xpose.msra.mxu0 0.0
    %262 = vmatprep.subr.mxu0 0.0
    %263 = vmatpush1.xpose.msra.mxu0 0.0
    %264 = vmatprep.subr.mxu0 0.0
    %265 = vmatpush1.xpose.msra.mxu0 0.0
    %266 = vmatprep.subr.mxu0 0.0
    %267 = vmatpush1.xpose.msra.mxu0 0.0
    %268 = vmatprep.subr.mxu0 0.0
    %269 = vmatpush1.xpose.msra.mxu0 0.0
    %270 = vmatprep.subr.mxu0 0.0
    %271 = vmatpush1.xpose.msra.mxu0 0.0
    %272 = vmatprep.subr.mxu0 0.0
    %273 = vmatpush1.xpose.msra.mxu0 0.0
    %274 = vmatprep.subr.mxu0 0.0
    %275 = vmatpush1.xpose.msra.mxu0 0.0
    %276 = vmatprep.subr.mxu0 0.0
    %277 = vmatpush1.xpose.msra.mxu0 0.0
    %278 = vmatprep.subr.mxu0 0.0
    %279 = vmatpush1.xpose.msra.mxu0 0.0
    %280 = vmatprep.subr.mxu0 0.0
    %281 = vmatpush1.xpose.msra.mxu0 0.0
    %282 = vmatprep.subr.mxu0 0.0
    %283 = vmatpush1.xpose.msra.mxu0 0.0
    %284 = vmatprep.subr.mxu0 0.0
    %285 = vmatpush1.xpose.msra.mxu0 0.0
    %286 = vmatprep.subr.mxu0 0.0
    %287 = vmatpush1.xpose.msra.mxu0 0.0
    %288 = vmatprep.subr.mxu0 0.0
    %289 = vmatpush1.xpose.msra.mxu0 0.0
    %290 = vmatprep.subr.mxu0 0.0
    %291 = vmatpush1.xpose.msra.mxu0 0.0
    %292 = vmatprep.subr.mxu0 0.0
    %293 = vmatpush1.xpose.msra.mxu0 0.0
    %294 = vmatprep.subr.mxu0 0.0
    %295 = vmatpush1.xpose.msra.mxu0 0.0
    %296 = vmatprep.subr.mxu0 0.0
    %297 = vmatpush1.xpose.msra.mxu0 0.0
    %298 = vmatprep.subr.mxu0 0.0
    %299 = vmatpush1.xpose.msra.mxu0 0.0
    %300 = vmatprep.subr.mxu0 0.0
    %301 = vmatpush1.xpose.msra.mxu0 0.0
    %302 = vmatprep.subr.mxu0 0.0
    %303 = vmatpush1.xpose.msra.mxu0 0.0
    %304 = vmatprep.subr.mxu0 0.0
    %305 = vmatpush1.xpose.msra.mxu0 0.0
    %306 = vmatprep.subr.mxu0 0.0
    %307 = vmatpush1.xpose.msra.mxu0 0.0
    %308 = vmatprep.subr.mxu0 0.0
    %309 = vmatpush1.xpose.msra.mxu0 0.0
    %310 = vmatprep.subr.mxu0 0.0
    %311 = vmatpush1.xpose.msra.mxu0 0.0
    %312 = vmatprep.subr.mxu0 0.0
    %313 = vmatpush1.xpose.msra.mxu0 0.0
    %314 = vmatprep.subr.mxu0 0.0
    %315 = vmatpush1.xpose.msra.mxu0 0.0
    %316 = vmatprep.mubr.f32.mxu0 0.0
    %317 = vmatmul.mubr.f32.gmra.mrb[0].mxu0 %v248
    %v318 = vpop.f32.mrb[0].mxu0
    %v319 = vadd.f32 0.0, %v318
    %v320 = vpop.f32.mrb[0].mxu0
    %321 = vdwg.mxu0
    %323 = vrot.lane.b32.xlu0 %v239, 96
    %v324 = vpop.permute.xlu0 %323
    %v326 = vsel %vm160, %v243, 0
    %v328 = vsel %vm160, %v324, 0
    %330 = vmatprep.subr.mxu0 0.0
    %331 = vmatpush1.xpose.msra.mxu0 %v328
    %332 = vmatprep.subr.mxu0 0.0
    %333 = vmatpush1.xpose.msra.mxu0 0.0
    %334 = vmatprep.subr.mxu0 0.0
    %335 = vmatpush1.xpose.msra.mxu0 0.0
    %336 = vmatprep.subr.mxu0 0.0
    %337 = vmatpush1.xpose.msra.mxu0 0.0
    %338 = vmatprep.subr.mxu0 0.0
    %339 = vmatpush1.xpose.msra.mxu0 0.0
    %340 = vmatprep.subr.mxu0 0.0
    %341 = vmatpush1.xpose.msra.mxu0 0.0
    %342 = vmatprep.subr.mxu0 0.0
    %343 = vmatpush1.xpose.msra.mxu0 0.0
    %344 = vmatprep.subr.mxu0 0.0
    %345 = vmatpush1.xpose.msra.mxu0 0.0
    %346 = vmatprep.subr.mxu0 0.0
    %347 = vmatpush1.xpose.msra.mxu0 0.0
    %348 = vmatprep.subr.mxu0 0.0
    %349 = vmatpush1.xpose.msra.mxu0 0.0
    %350 = vmatprep.subr.mxu0 0.0
    %351 = vmatpush1.xpose.msra.mxu0 0.0
    %352 = vmatprep.subr.mxu0 0.0
    %353 = vmatpush1.xpose.msra.mxu0 0.0
    %354 = vmatprep.subr.mxu0 0.0
    %355 = vmatpush1.xpose.msra.mxu0 0.0
    %356 = vmatprep.subr.mxu0 0.0
    %357 = vmatpush1.xpose.msra.mxu0 0.0
    %358 = vmatprep.subr.mxu0 0.0
    %359 = vmatpush1.xpose.msra.mxu0 0.0
    %360 = vmatprep.subr.mxu0 0.0
    %361 = vmatpush1.xpose.msra.mxu0 0.0
    %362 = vmatprep.subr.mxu0 0.0
    %363 = vmatpush1.xpose.msra.mxu0 0.0
    %364 = vmatprep.subr.mxu0 0.0
    %365 = vmatpush1.xpose.msra.mxu0 0.0
    %366 = vmatprep.subr.mxu0 0.0
    %367 = vmatpush1.xpose.msra.mxu0 0.0
    %368 = vmatprep.subr.mxu0 0.0
    %369 = vmatpush1.xpose.msra.mxu0 0.0
    %370 = vmatprep.subr.mxu0 0.0
    %371 = vmatpush1.xpose.msra.mxu0 0.0
    %372 = vmatprep.subr.mxu0 0.0
    %373 = vmatpush1.xpose.msra.mxu0 0.0
    %374 = vmatprep.subr.mxu0 0.0
    %375 = vmatpush1.xpose.msra.mxu0 0.0
    %376 = vmatprep.subr.mxu0 0.0
    %377 = vmatpush1.xpose.msra.mxu0 0.0
    %378 = vmatprep.subr.mxu0 0.0
    %379 = vmatpush1.xpose.msra.mxu0 0.0
    %380 = vmatprep.subr.mxu0 0.0
    %381 = vmatpush1.xpose.msra.mxu0 0.0
    %382 = vmatprep.subr.mxu0 0.0
    %383 = vmatpush1.xpose.msra.mxu0 0.0
    %384 = vmatprep.subr.mxu0 0.0
    %385 = vmatpush1.xpose.msra.mxu0 0.0
    %386 = vmatprep.subr.mxu0 0.0
    %387 = vmatpush1.xpose.msra.mxu0 0.0
    %388 = vmatprep.subr.mxu0 0.0
    %389 = vmatpush1.xpose.msra.mxu0 0.0
    %390 = vmatprep.subr.mxu0 0.0
    %391 = vmatpush1.xpose.msra.mxu0 0.0
    %392 = vmatprep.subr.mxu0 0.0
    %393 = vmatpush1.xpose.msra.mxu0 0.0
    %394 = vmatprep.mubr.f32.mxu0 0.0
    %395 = vmatmul.mubr.f32.gmra.mrb[0].mxu0 %v326
    %v396 = vpop.f32.mrb[0].mxu0
    %v397 = vadd.f32 0.0, %v396
    %v398 = vpop.f32.mrb[0].mxu0
    %399 = vdwg.mxu0
    %vm400 = vcmask 64512
    %v401 = vsel %vm400, %v319, -inf
    %402 = vmax.xlane.f32.xlu0 %v401
    %v403 = vpop.xlane.xlu0 %402
    %v404 = vsel %vm400, %v397, -inf
    %405 = vmax.xlane.f32.xlu0 %v404
    %v406 = vpop.xlane.xlu0 %405
    %v407 = vsub.f32 %v319, %v403
    %v408 = vsub.f32 %v397, %v406
    %v409 = vmul.f32 %v407, 1.442695
    %v410 = vpow.pop %v409
    %v411 = vmul.f32 %v408, 1.442695
    %v412 = vpow.pop %v411
    %v413 = vsel %vm400, %v410, 0.0
    %414 = vadd.xlane.f32.xlu0 %v413
    %v415 = vpop.xlane.xlu0 %414
    %v416 = vsel %vm400, %v412, 0.0
    %417 = vadd.xlane.f32.xlu0 %v416
    %v418 = vpop.xlane.xlu0 %417
    %v419 = vrcp.pop %v415
    %v420 = vrcp.pop %v418
    %v421 = vmul.f32 %v410, %v419
    %v422 = vmul.f32 %v412, %v420
    %423 = vrot.lane.b32.xlu0 %v234, 64
    %v424 = vpop.permute.xlu0 %423
    %v427 = vsel %vm400, %v421, 0
    %429 = vmatprep.subr.mxu0 0.0
    %430 = vmatpush1.msra.mxu0 %v424
    %431 = vmatprep.subr.mxu0 0.0
    %432 = vmatpush1.msra.mxu0 0.0
    %433 = vmatprep.subr.mxu0 0.0
    %434 = vmatpush1.msra.mxu0 0.0
    %435 = vmatprep.subr.mxu0 0.0
    %436 = vmatpush1.msra.mxu0 0.0
    %437 = vmatprep.subr.mxu0 0.0
    %438 = vmatpush1.msra.mxu0 0.0
    %439 = vmatprep.subr.mxu0 0.0
    %440 = vmatpush1.msra.mxu0 0.0
    %441 = vmatprep.subr.mxu0 0.0
    %442 = vmatpush1.msra.mxu0 0.0
    %443 = vmatprep.subr.mxu0 0.0
    %444 = vmatpush1.msra.mxu0 0.0
    %445 = vmatprep.subr.mxu0 0.0
    %446 = vmatpush1.msra.mxu0 0.0
    %447 = vmatprep.subr.mxu0 0.0
    %448 = vmatpush1.msra.mxu0 0.0
    %449 = vmatprep.subr.mxu0 0.0
    %450 = vmatpush1.msra.mxu0 0.0
    %451 = vmatprep.subr.mxu0 0.0
    %452 = vmatpush1.msra.mxu0 0.0
    %453 = vmatprep.subr.mxu0 0.0
    %454 = vmatpush1.msra.mxu0 0.0
    %455 = vmatprep.subr.mxu0 0.0
    %456 = vmatpush1.msra.mxu0 0.0
    %457 = vmatprep.subr.mxu0 0.0
    %458 = vmatpush1.msra.mxu0 0.0
    %459 = vmatprep.subr.mxu0 0.0
    %460 = vmatpush1.msra.mxu0 0.0
    %461 = vmatprep.subr.mxu0 0.0
    %462 = vmatpush1.msra.mxu0 0.0
    %463 = vmatprep.subr.mxu0 0.0
    %464 = vmatpush1.msra.mxu0 0.0
    %465 = vmatprep.subr.mxu0 0.0
    %466 = vmatpush1.msra.mxu0 0.0
    %467 = vmatprep.subr.mxu0 0.0
    %468 = vmatpush1.msra.mxu0 0.0
    %469 = vmatprep.subr.mxu0 0.0
    %470 = vmatpush1.msra.mxu0 0.0
    %471 = vmatprep.subr.mxu0 0.0
    %472 = vmatpush1.msra.mxu0 0.0
    %473 = vmatprep.subr.mxu0 0.0
    %474 = vmatpush1.msra.mxu0 0.0
    %475 = vmatprep.subr.mxu0 0.0
    %476 = vmatpush1.msra.mxu0 0.0
    %477 = vmatprep.subr.mxu0 0.0
    %478 = vmatpush1.msra.mxu0 0.0
    %479 = vmatprep.subr.mxu0 0.0
    %480 = vmatpush1.msra.mxu0 0.0
    %481 = vmatprep.subr.mxu0 0.0
    %482 = vmatpush1.msra.mxu0 0.0
    %483 = vmatprep.subr.mxu0 0.0
    %484 = vmatpush1.msra.mxu0 0.0
    %485 = vmatprep.subr.mxu0 0.0
    %486 = vmatpush1.msra.mxu0 0.0
    %487 = vmatprep.subr.mxu0 0.0
    %488 = vmatpush1.msra.mxu0 0.0
    %489 = vmatprep.subr.mxu0 0.0
    %490 = vmatpush1.msra.mxu0 0.0
    %491 = vmatprep.subr.mxu0 0.0
    %492 = vmatpush1.msra.mxu0 0.0
    %493 = vmatprep.mubr.f32.mxu0 0.0
    %494 = vmatmul.mubr.f32.gmra.mrb[0].mxu0 %v427
    %v495 = vpop.f32.mrb[0].mxu0
    %v496 = vadd.f32 0.0, %v495
    %v497 = vpop.f32.mrb[0].mxu0
    %498 = vdwg.mxu0
    %499 = vrot.lane.b32.xlu0 %v239, 64
    %v500 = vpop.permute.xlu0 %499
    %v503 = vsel %vm400, %v422, 0
    %505 = vmatprep.subr.mxu0 0.0
    %506 = vmatpush1.msra.mxu0 %v500
    %507 = vmatprep.subr.mxu0 0.0
    %508 = vmatpush1.msra.mxu0 0.0
    %509 = vmatprep.subr.mxu0 0.0
    %510 = vmatpush1.msra.mxu0 0.0
    %511 = vmatprep.subr.mxu0 0.0
    %512 = vmatpush1.msra.mxu0 0.0
    %513 = vmatprep.subr.mxu0 0.0
    %514 = vmatpush1.msra.mxu0 0.0
    %515 = vmatprep.subr.mxu0 0.0
    %516 = vmatpush1.msra.mxu0 0.0
    %517 = vmatprep.subr.mxu0 0.0
    %518 = vmatpush1.msra.mxu0 0.0
    %519 = vmatprep.subr.mxu0 0.0
    %520 = vmatpush1.msra.mxu0 0.0
    %521 = vmatprep.subr.mxu0 0.0
    %522 = vmatpush1.msra.mxu0 0.0
    %523 = vmatprep.subr.mxu0 0.0
    %524 = vmatpush1.msra.mxu0 0.0
    %525 = vmatprep.subr.mxu0 0.0
    %526 = vmatpush1.msra.mxu0 0.0
    %527 = vmatprep.subr.mxu0 0.0
    %528 = vmatpush1.msra.mxu0 0.0
    %529 = vmatprep.subr.mxu0 0.0
    %530 = vmatpush1.msra.mxu0 0.0
    %531 = vmatprep.subr.mxu0 0.0
    %532 = vmatpush1.msra.mxu0 0.0
    %533 = vmatprep.subr.mxu0 0.0
    %534 = vmatpush1.msra.mxu0 0.0
    %535 = vmatprep.subr.mxu0 0.0
    %536 = vmatpush1.msra.mxu0 0.0
    %537 = vmatprep.subr.mxu0 0.0
    %538 = vmatpush1.msra.mxu0 0.0
    %539 = vmatprep.subr.mxu0 0.0
    %540 = vmatpush1.msra.mxu0 0.0
    %541 = vmatprep.subr.mxu0 0.0
    %542 = vmatpush1.msra.mxu0 0.0
    %543 = vmatprep.subr.mxu0 0.0
    %544 = vmatpush1.msra.mxu0 0.0
    %545 = vmatprep.subr.mxu0 0.0
    %546 = vmatpush1.msra.mxu0 0.0
    %547 = vmatprep.subr.mxu0 0.0
    %548 = vmatpush1.msra.mxu0 0.0
    %549 = vmatprep.subr.mxu0 0.0
    %550 = vmatpush1.msra.mxu0 0.0
    %551 = vmatprep.subr.mxu0 0.0
    %552 = vmatpush1.msra.mxu0 0.0
    %553 = vmatprep.subr.mxu0 0.0
    %554 = vmatpush1.msra.mxu0 0.0
    %555 = vmatprep.subr.mxu0 0.0
    %556 = vmatpush1.msra.mxu0 0.0
    %557 = vmatprep.subr.mxu0 0.0
    %558 = vmatpush1.msra.mxu0 0.0
    %559 = vmatprep.subr.mxu0 0.0
    %560 = vmatpush1.msra.mxu0 0.0
    %561 = vmatprep.subr.mxu0 0.0
    %562 = vmatpush1.msra.mxu0 0.0
    %563 = vmatprep.subr.mxu0 0.0
    %564 = vmatpush1.msra.mxu0 0.0
    %565 = vmatprep.subr.mxu0 0.0
    %566 = vmatpush1.msra.mxu0 0.0
    %567 = vmatprep.subr.mxu0 0.0
    %568 = vmatpush1.msra.mxu0 0.0
    %569 = vmatprep.mubr.f32.mxu0 0.0
    %570 = vmatmul.mubr.f32.gmra.mrb[0].mxu0 %v503
    %v571 = vpop.f32.mrb[0].mxu0
    %v572 = vadd.f32 0.0, %v571
    %v573 = vpop.f32.mrb[0].mxu0
    %574 = vdwg.mxu0
    %v575 = vld [vmem:[%s5] sm:$0xff]
    %v576 = vld [vmem:[%s5 + $0x8] sm:$0xff]
    %v577 = vld [vmem:[%s5 + $0x10] sm:$0xff]
    %v578 = vld [vmem:[%s5 + $0x18] sm:$0xff]
    %v579 = vlaneseq
    %v580 = vshrl.u32 %v579, 7
    %v581 = vsub.s32 0, %v580
    %v582 = vrot.slane %v148, %v581
    %v584 = vsel %vm160, %v496, 0
    %v587 = vsel %vm160, %v572, 0
    %589 = vmatprep.subr.mxu0 0.0
    %590 = vmatpush1.msra.mxu0 %v575
    %591 = vmatprep.subr.mxu0 0.0
    %592 = vmatpush1.msra.mxu0 %v576
    %593 = vmatprep.subr.mxu0 0.0
    %594 = vmatpush1.msra.mxu0 %v577
    %595 = vmatprep.subr.mxu0 0.0
    %596 = vmatpush1.msra.mxu0 %v578
    %597 = vmatprep.subr.mxu0 0.0
    %598 = vmatpush1.msra.mxu0 0.0
    %599 = vmatprep.subr.mxu0 0.0
    %600 = vmatpush1.msra.mxu0 0.0
    %601 = vmatprep.subr.mxu0 0.0
    %602 = vmatpush1.msra.mxu0 0.0
    %603 = vmatprep.subr.mxu0 0.0
    %604 = vmatpush1.msra.mxu0 0.0
    %605 = vmatprep.subr.mxu0 0.0
    %606 = vmatpush1.msra.mxu0 0.0
    %607 = vmatprep.subr.mxu0 0.0
    %608 = vmatpush1.msra.mxu0 0.0
    %609 = vmatprep.subr.mxu0 0.0
    %610 = vmatpush1.msra.mxu0 0.0
    %611 = vmatprep.subr.mxu0 0.0
    %612 = vmatpush1.msra.mxu0 0.0
    %613 = vmatprep.subr.mxu0 0.0
    %614 = vmatpush1.msra.mxu0 0.0
    %615 = vmatprep.subr.mxu0 0.0
    %616 = vmatpush1.msra.mxu0 0.0
    %617 = vmatprep.subr.mxu0 0.0
    %618 = vmatpush1.msra.mxu0 0.0
    %619 = vmatprep.subr.mxu0 0.0
    %620 = vmatpush1.msra.mxu0 0.0
    %621 = vmatprep.subr.mxu0 0.0
    %622 = vmatpush1.msra.mxu0 0.0
    %623 = vmatprep.subr.mxu0 0.0
    %624 = vmatpush1.msra.mxu0 0.0
    %625 = vmatprep.subr.mxu0 0.0
    %626 = vmatpush1.msra.mxu0 0.0
    %627 = vmatprep.subr.mxu0 0.0
    %628 = vmatpush1.msra.mxu0 0.0
    %629 = vmatprep.subr.mxu0 0.0
    %630 = vmatpush1.msra.mxu0 0.0
    %631 = vmatprep.subr.mxu0 0.0
    %632 = vmatpush1.msra.mxu0 0.0
    %633 = vmatprep.subr.mxu0 0.0
    %634 = vmatpush1.msra.mxu0 0.0
    %635 = vmatprep.subr.mxu0 0.0
    %636 = vmatpush1.msra.mxu0 0.0
    %637 = vmatprep.subr.mxu0 0.0
    %638 = vmatpush1.msra.mxu0 0.0
    %639 = vmatprep.subr.mxu0 0.0
    %640 = vmatpush1.msra.mxu0 0.0
    %641 = vmatprep.subr.mxu0 0.0
    %642 = vmatpush1.msra.mxu0 0.0
    %643 = vmatprep.subr.mxu0 0.0
    %644 = vmatpush1.msra.mxu0 0.0
    %645 = vmatprep.subr.mxu0 0.0
    %646 = vmatpush1.msra.mxu0 0.0
    %647 = vmatprep.subr.mxu0 0.0
    %648 = vmatpush1.msra.mxu0 0.0
    %649 = vmatprep.subr.mxu0 0.0
    %650 = vmatpush1.msra.mxu0 0.0
    %651 = vmatprep.subr.mxu0 0.0
    %652 = vmatpush1.msra.mxu0 0.0
    %653 = vmatprep.mubr.f32.mxu0 0.0
    %654 = vmatmul.mubr.f32.gmra.mrb[0].mxu0 %v584
    %v655 = vpop.f32.mrb[0].mxu0
    %v656 = vadd.f32 %v582, %v655
    %v657 = vpop.f32.mrb[0].mxu0
    %658 = vmatprep.mubr.f32.mxu0 0.0
    %659 = vmatmul.mubr.f32.gmra.mrb[0].mxu0 %v587
    %v660 = vpop.f32.mrb[0].mxu0
    %v661 = vadd.f32 %v582, %v660
    %v662 = vpop.f32.mrb[0].mxu0
    %663 = vdwg.mxu0
    %v664 = vadd.f32 %v144, %v656
    %v665 = vadd.f32 %v145, %v661
    %v666 = vsel %vm160, %v664, 0.0
    %667 = vadd.xlane.f32.xlu0 %v666
    %v668 = vpop.xlane.xlu0 %667
    %v669 = vsel %vm160, %v665, 0.0
    %670 = vadd.xlane.f32.xlu0 %v669
    %v671 = vpop.xlane.xlu0 %670
    %v672 = vrcp.pop 32.0
    %v673 = vmul.f32 %v668, %v672
    %v674 = vmul.f32 %v671, %v672
    %v675 = vsub.f32 %v664, %v673
    %v676 = vsub.f32 %v665, %v674
    %v677 = vmul.f32 %v675, %v675
    %v678 = vmul.f32 %v676, %v676
    %v679 = vsel %vm160, %v677, 0.0
    %680 = vadd.xlane.f32.xlu0 %v679
    %v681 = vpop.xlane.xlu0 %680
    %v682 = vsel %vm160, %v678, 0.0
    %683 = vadd.xlane.f32.xlu0 %v682
    %v684 = vpop.xlane.xlu0 %683
    %v685 = vmul.f32 %v681, %v672
    %v686 = vmul.f32 %v684, %v672
    %v687 = vadd.f32 %v685, 1e-05
    %v688 = vadd.f32 %v686, 1e-05
    %v689 = vrsqrt.pop %v687
    %v690 = vrsqrt.pop %v688
    %v691 = vmul.f32 %v675, %v689
    %v692 = vmul.f32 %v676, %v690
    %v693 = vlaneseq
    %v694 = vshrl.u32 %v693, 7
    %v695 = vsub.s32 0, %v694
    %v696 = vrot.slane %v146, %v695
    %v697 = vmul.f32 %v691, %v696
    %v698 = vmul.f32 %v692, %v696
    %v699 = vlaneseq
    %v700 = vshrl.u32 %v699, 7
    %v701 = vsub.s32 0, %v700
    %v702 = vrot.slane %v147, %v701
    %v703 = vadd.f32 %v697, %v702
    %v704 = vadd.f32 %v698, %v702
    %v705 = vld [vmem:[%s6] sm:$0xff]
    %v706 = vld [vmem:[%s6 + $0x8] sm:$0xff]
    %v707 = vld [vmem:[%s6 + $0x10] sm:$0xff]
    %v708 = vld [vmem:[%s6 + $0x18] sm:$0xff]
    %v709 = vld [vmem:[#allocation8] sm:$0x1]
    %v711 = vlaneseq
    %v712 = vshrl.u32 %v711, 7
    %v713 = vsub.s32 0, %v712
    %v714 = vrot.slane %v709, %v713
    %v717 = vsel %vm160, %v703, 0
    %v720 = vsel %vm160, %v704, 0
    %722 = vmatprep.subr.mxu0 0.0
    %723 = vmatpush1.msra.mxu0 %v705
    %724 = vmatprep.subr.mxu0 0.0
    %725 = vmatpush1.msra.mxu0 %v706
    %726 = vmatprep.subr.mxu0 0.0
    %727 = vmatpush1.msra.mxu0 %v707
    %728 = vmatprep.subr.mxu0 0.0
    %729 = vmatpush1.msra.mxu0 %v708
    %730 = vmatprep.subr.mxu0 0.0
    %731 = vmatpush1.msra.mxu0 0.0
    %732 = vmatprep.subr.mxu0 0.0
    %733 = vmatpush1.msra.mxu0 0.0
    %734 = vmatprep.subr.mxu0 0.0
    %735 = vmatpush1.msra.mxu0 0.0
    %736 = vmatprep.subr.mxu0 0.0
    %737 = vmatpush1.msra.mxu0 0.0
    %738 = vmatprep.subr.mxu0 0.0
    %739 = vmatpush1.msra.mxu0 0.0
    %740 = vmatprep.subr.mxu0 0.0
    %741 = vmatpush1.msra.mxu0 0.0
    %742 = vmatprep.subr.mxu0 0.0
    %743 = vmatpush1.msra.mxu0 0.0
    %744 = vmatprep.subr.mxu0 0.0
    %745 = vmatpush1.msra.mxu0 0.0
    %746 = vmatprep.subr.mxu0 0.0
    %747 = vmatpush1.msra.mxu0 0.0
    %748 = vmatprep.subr.mxu0 0.0
    %749 = vmatpush1.msra.mxu0 0.0
    %750 = vmatprep.subr.mxu0 0.0
    %751 = vmatpush1.msra.mxu0 0.0
    %752 = vmatprep.subr.mxu0 0.0
    %753 = vmatpush1.msra.mxu0 0.0
    %754 = vmatprep.subr.mxu0 0.0
    %755 = vmatpush1.msra.mxu0 0.0
    %756 = vmatprep.subr.mxu0 0.0
    %757 = vmatpush1.msra.mxu0 0.0
    %758 = vmatprep.subr.mxu0 0.0
    %759 = vmatpush1.msra.mxu0 0.0
    %760 = vmatprep.subr.mxu0 0.0
    %761 = vmatpush1.msra.mxu0 0.0
    %762 = vmatprep.subr.mxu0 0.0
    %763 = vmatpush1.msra.mxu0 0.0
    %764 = vmatprep.subr.mxu0 0.0
    %765 = vmatpush1.msra.mxu0 0.0
    %766 = vmatprep.subr.mxu0 0.0
    %767 = vmatpush1.msra.mxu0 0.0
    %768 = vmatprep.subr.mxu0 0.0
    %769 = vmatpush1.msra.mxu0 0.0
    %770 = vmatprep.subr.mxu0 0.0
    %771 = vmatpush1.msra.mxu0 0.0
    %772 = vmatprep.subr.mxu0 0.0
    %773 = vmatpush1.msra.mxu0 0.0
    %774 = vmatprep.subr.mxu0 0.0
    %775 = vmatpush1.msra.mxu0 0.0
    %776 = vmatprep.subr.mxu0 0.0
    %777 = vmatpush1.msra.mxu0 0.0
    %778 = vmatprep.subr.mxu0 0.0
    %779 = vmatpush1.msra.mxu0 0.0
    %780 = vmatprep.subr.mxu0 0.0
    %781 = vmatpush1.msra.mxu0 0.0
    %782 = vmatprep.subr.mxu0 0.0
    %783 = vmatpush1.msra.mxu0 0.0
    %784 = vmatprep.subr.mxu0 0.0
    %785 = vmatpush1.msra.mxu0 0.0
    %786 = vmatprep.mubr.f32.mxu0 0.0
    %787 = vmatmul.mubr.f32.gmra.mrb[0].mxu0 %v717
    %v788 = vpop.f32.mrb[0].mxu0
    %v789 = vadd.f32 %v714, %v788
    %v790 = vpop.f32.mrb[0].mxu0
    %791 = vmatprep.mubr.f32.mxu0 0.0
    %792 = vmatmul.mubr.f32.gmra.mrb[0].mxu0 %v720
    %v793 = vpop.f32.mrb[0].mxu0
    %v794 = vadd.f32 %v714, %v793
    %v795 = vpop.f32.mrb[0].mxu0
    %796 = vdwg.mxu0
    %v797 = vmul.f32 %v789, 0.35355338
    %v798 = vmul.f32 %v794, 0.35355338
    %v799 = vld [vmem:[#allocation5] sm:$0xff]
    %v800 = vld [vmem:[#allocation5 + $0x8] sm:$0xff]
    %v802 = vsel %vm160, %v797, 0
    %v805 = vsel %vm160, %v799, 0
    %807 = vmatprep.subr.mxu0 0.0
    %808 = vmatpush1.xpose.msra.mxu0 %v805
    %809 = vmatprep.subr.mxu0 0.0
    %810 = vmatpush1.xpose.msra.mxu0 0.0
    %811 = vmatprep.subr.mxu0 0.0
    %812 = vmatpush1.xpose.msra.mxu0 0.0
    %813 = vmatprep.subr.mxu0 0.0
    %814 = vmatpush1.xpose.msra.mxu0 0.0
    %815 = vmatprep.subr.mxu0 0.0
    %816 = vmatpush1.xpose.msra.mxu0 0.0
    %817 = vmatprep.subr.mxu0 0.0
    %818 = vmatpush1.xpose.msra.mxu0 0.0
    %819 = vmatprep.subr.mxu0 0.0
    %820 = vmatpush1.xpose.msra.mxu0 0.0
    %821 = vmatprep.subr.mxu0 0.0
    %822 = vmatpush1.xpose.msra.mxu0 0.0
    %823 = vmatprep.subr.mxu0 0.0
    %824 = vmatpush1.xpose.msra.mxu0 0.0
    %825 = vmatprep.subr.mxu0 0.0
    %826 = vmatpush1.xpose.msra.mxu0 0.0
    %827 = vmatprep.subr.mxu0 0.0
    %828 = vmatpush1.xpose.msra.mxu0 0.0
    %829 = vmatprep.subr.mxu0 0.0
    %830 = vmatpush1.xpose.msra.mxu0 0.0
    %831 = vmatprep.subr.mxu0 0.0
    %832 = vmatpush1.xpose.msra.mxu0 0.0
    %833 = vmatprep.subr.mxu0 0.0
    %834 = vmatpush1.xpose.msra.mxu0 0.0
    %835 = vmatprep.subr.mxu0 0.0
    %836 = vmatpush1.xpose.msra.mxu0 0.0
    %837 = vmatprep.subr.mxu0 0.0
    %838 = vmatpush1.xpose.msra.mxu0 0.0
    %839 = vmatprep.subr.mxu0 0.0
    %840 = vmatpush1.xpose.msra.mxu0 0.0
    %841 = vmatprep.subr.mxu0 0.0
    %842 = vmatpush1.xpose.msra.mxu0 0.0
    %843 = vmatprep.subr.mxu0 0.0
    %844 = vmatpush1.xpose.msra.mxu0 0.0
    %845 = vmatprep.subr.mxu0 0.0
    %846 = vmatpush1.xpose.msra.mxu0 0.0
    %847 = vmatprep.subr.mxu0 0.0
    %848 = vmatpush1.xpose.msra.mxu0 0.0
    %849 = vmatprep.subr.mxu0 0.0
    %850 = vmatpush1.xpose.msra.mxu0 0.0
    %851 = vmatprep.subr.mxu0 0.0
    %852 = vmatpush1.xpose.msra.mxu0 0.0
    %853 = vmatprep.subr.mxu0 0.0
    %854 = vmatpush1.xpose.msra.mxu0 0.0
    %855 = vmatprep.subr.mxu0 0.0
    %856 = vmatpush1.xpose.msra.mxu0 0.0
    %857 = vmatprep.subr.mxu0 0.0
    %858 = vmatpush1.xpose.msra.mxu0 0.0
    %859 = vmatprep.subr.mxu0 0.0
    %860 = vmatpush1.xpose.msra.mxu0 0.0
    %861 = vmatprep.subr.mxu0 0.0
    %862 = vmatpush1.xpose.msra.mxu0 0.0
    %863 = vmatprep.subr.mxu0 0.0
    %864 = vmatpush1.xpose.msra.mxu0 0.0
    %865 = vmatprep.subr.mxu0 0.0
    %866 = vmatpush1.xpose.msra.mxu0 0.0
    %867 = vmatprep.subr.mxu0 0.0
    %868 = vmatpush1.xpose.msra.mxu0 0.0
    %869 = vmatprep.subr.mxu0 0.0
    %870 = vmatpush1.xpose.msra.mxu0 0.0
    %871 = vmatprep.mubr.f32.mxu0 0.0
    %872 = vmatmul.mubr.f32.gmra.mrb[0].mxu0 %v802
    %v873 = vpop.f32.mrb[0].mxu0
    %v874 = vadd.f32 0.0, %v873
    %v875 = vpop.f32.mrb[0].mxu0
    %876 = vdwg.mxu0
    %v878 = vsel %vm160, %v798, 0
    %v881 = vsel %vm160, %v800, 0
    %883 = vmatprep.subr.mxu0 0.0
    %884 = vmatpush1.xpose.msra.mxu0 %v881
    %885 = vmatprep.subr.mxu0 0.0
    %886 = vmatpush1.xpose.msra.mxu0 0.0
    %887 = vmatprep.subr.mxu0 0.0
    %888 = vmatpush1.xpose.msra.mxu0 0.0
    %889 = vmatprep.subr.mxu0 0.0
    %890 = vmatpush1.xpose.msra.mxu0 0.0
    %891 = vmatprep.subr.mxu0 0.0
    %892 = vmatpush1.xpose.msra.mxu0 0.0
    %893 = vmatprep.subr.mxu0 0.0
    %894 = vmatpush1.xpose.msra.mxu0 0.0
    %895 = vmatprep.subr.mxu0 0.0
    %896 = vmatpush1.xpose.msra.mxu0 0.0
    %897 = vmatprep.subr.mxu0 0.0
    %898 = vmatpush1.xpose.msra.mxu0 0.0
    %899 = vmatprep.subr.mxu0 0.0
    %900 = vmatpush1.xpose.msra.mxu0 0.0
    %901 = vmatprep.subr.mxu0 0.0
    %902 = vmatpush1.xpose.msra.mxu0 0.0
    %903 = vmatprep.subr.mxu0 0.0
    %904 = vmatpush1.xpose.msra.mxu0 0.0
    %905 = vmatprep.subr.mxu0 0.0
    %906 = vmatpush1.xpose.msra.mxu0 0.0
    %907 = vmatprep.subr.mxu0 0.0
    %908 = vmatpush1.xpose.msra.mxu0 0.0
    %909 = vmatprep.subr.mxu0 0.0
    %910 = vmatpush1.xpose.msra.mxu0 0.0
    %911 = vmatprep.subr.mxu0 0.0
    %912 = vmatpush1.xpose.msra.mxu0 0.0
    %913 = vmatprep.subr.mxu0 0.0
    %914 = vmatpush1.xpose.msra.mxu0 0.0
    %915 = vmatprep.subr.mxu0 0.0
    %916 = vmatpush1.xpose.msra.mxu0 0.0
    %917 = vmatprep.subr.mxu0 0.0
    %918 = vmatpush1.xpose.msra.mxu0 0.0
    %919 = vmatprep.subr.mxu0 0.0
    %920 = vmatpush1.xpose.msra.mxu0 0.0
    %921 = vmatprep.subr.mxu0 0.0
    %922 = vmatpush1.xpose.msra.mxu0 0.0
    %923 = vmatprep.subr.mxu0 0.0
    %924 = vmatpush1.xpose.msra.mxu0 0.0
    %925 = vmatprep.subr.mxu0 0.0
    %926 = vmatpush1.xpose.msra.mxu0 0.0
    %927 = vmatprep.subr.mxu0 0.0
    %928 = vmatpush1.xpose.msra.mxu0 0.0
    %929 = vmatprep.subr.mxu0 0.0
    %930 = vmatpush1.xpose.msra.mxu0 0.0
    %931 = vmatprep.subr.mxu0 0.0
    %932 = vmatpush1.xpose.msra.mxu0 0.0
    %933 = vmatprep.subr.mxu0 0.0
    %934 = vmatpush1.xpose.msra.mxu0 0.0
    %935 = vmatprep.subr.mxu0 0.0
    %936 = vmatpush1.xpose.msra.mxu0 0.0
    %937 = vmatprep.subr.mxu0 0.0
    %938 = vmatpush1.xpose.msra.mxu0 0.0
    %939 = vmatprep.subr.mxu0 0.0
    %940 = vmatpush1.xpose.msra.mxu0 0.0
    %941 = vmatprep.subr.mxu0 0.0
    %942 = vmatpush1.xpose.msra.mxu0 0.0
    %943 = vmatprep.subr.mxu0 0.0
    %944 = vmatpush1.xpose.msra.mxu0 0.0
    %945 = vmatprep.subr.mxu0 0.0
    %946 = vmatpush1.xpose.msra.mxu0 0.0
    %947 = vmatprep.mubr.f32.mxu0 0.0
    %948 = vmatmul.mubr.f32.gmra.mrb[0].mxu0 %v878
    %v949 = vpop.f32.mrb[0].mxu0
    %v950 = vadd.f32 0.0, %v949
    %v951 = vpop.f32.mrb[0].mxu0
    %952 = vdwg.mxu0
    %v953 = vsel %vm400, %v874, -inf
    %954 = vmax.xlane.f32.xlu0 %v953
    %v955 = vpop.xlane.xlu0 %954
    %v956 = vsel %vm400, %v950, -inf
    %957 = vmax.xlane.f32.xlu0 %v956
    %v958 = vpop.xlane.xlu0 %957
    %v959 = vsub.f32 %v874, %v955
    %v960 = vsub.f32 %v950, %v958
    %v961 = vmul.f32 %v959, 1.442695
    %v962 = vpow.pop %v961
    %v963 = vmul.f32 %v960, 1.442695
    %v964 = vpow.pop %v963
    %v965 = vsel %vm400, %v962, 0.0
    %966 = vadd.xlane.f32.xlu0 %v965
    %v967 = vpop.xlane.xlu0 %966
    %v968 = vsel %vm400, %v964, 0.0
    %969 = vadd.xlane.f32.xlu0 %v968
    %v970 = vpop.xlane.xlu0 %969
    %v971 = vrcp.pop %v967
    %v972 = vrcp.pop %v970
    %v973 = vmul.f32 %v962, %v971
    %v974 = vmul.f32 %v964, %v972
    %v975 = vld [vmem:[#allocation7] sm:$0xff]
    %v976 = vld [vmem:[#allocation7 + $0x8] sm:$0xff]
    %v978 = vsel %vm400, %v973, 0
    %980 = vmatprep.subr.mxu0 0.0
    %981 = vmatpush1.msra.mxu0 %v975
    %982 = vmatprep.subr.mxu0 0.0
    %983 = vmatpush1.msra.mxu0 0.0
    %984 = vmatprep.subr.mxu0 0.0
    %985 = vmatpush1.msra.mxu0 0.0
    %986 = vmatprep.subr.mxu0 0.0
    %987 = vmatpush1.msra.mxu0 0.0
    %988 = vmatprep.subr.mxu0 0.0
    %989 = vmatpush1.msra.mxu0 0.0
    %990 = vmatprep.subr.mxu0 0.0
    %991 = vmatpush1.msra.mxu0 0.0
    %992 = vmatprep.subr.mxu0 0.0
    %993 = vmatpush1.msra.mxu0 0.0
    %994 = vmatprep.subr.mxu0 0.0
    %995 = vmatpush1.msra.mxu0 0.0
    %996 = vmatprep.subr.mxu0 0.0
    %997 = vmatpush1.msra.mxu0 0.0
    %998 = vmatprep.subr.mxu0 0.0
    %999 = vmatpush1.msra.mxu0 0.0
    %1000 = vmatprep.subr.mxu0 0.0
    %1001 = vmatpush1.msra.mxu0 0.0
    %1002 = vmatprep.subr.mxu0 0.0
    %1003 = vmatpush1.msra.mxu0 0.0
    %1004 = vmatprep.subr.mxu0 0.0
    %1005 = vmatpush1.msra.mxu0 0.0
    %1006 = vmatprep.subr.mxu0 0.0
    %1007 = vmatpush1.msra.mxu0 0.0
    %1008 = vmatprep.subr.mxu0 0.0
    %1009 = vmatpush1.msra.mxu0 0.0
    %1010 = vmatprep.subr.mxu0 0.0
    %1011 = vmatpush1.msra.mxu0 0.0
    %1012 = vmatprep.subr.mxu0 0.0
    %1013 = vmatpush1.msra.mxu0 0.0
    %1014 = vmatprep.subr.mxu0 0.0
    %1015 = vmatpush1.msra.mxu0 0.0
    %1016 = vmatprep.subr.mxu0 0.0
    %1017 = vmatpush1.msra.mxu0 0.0
    %1018 = vmatprep.subr.mxu0 0.0
    %1019 = vmatpush1.msra.mxu0 0.0
    %1020 = vmatprep.subr.mxu0 0.0
    %1021 = vmatpush1.msra.mxu0 0.0
    %1022 = vmatprep.subr.mxu0 0.0
    %1023 = vmatpush1.msra.mxu0 0.0
    %1024 = vmatprep.subr.mxu0 0.0
    %1025 = vmatpush1.msra.mxu0 0.0
    %1026 = vmatprep.subr.mxu0 0.0
    %1027 = vmatpush1.msra.mxu0 0.0
    %1028 = vmatprep.subr.mxu0 0.0
    %1029 = vmatpush1.msra.mxu0 0.0
    %1030 = vmatprep.subr.mxu0 0.0
    %1031 = vmatpush1.msra.mxu0 0.0
    %1032 = vmatprep.subr.mxu0 0.0
    %1033 = vmatpush1.msra.mxu0 0.0
    %1034 = vmatprep.subr.mxu0 0.0
    %1035 = vmatpush1.msra.mxu0 0.0
    %1036 = vmatprep.subr.mxu0 0.0
    %1037 = vmatpush1.msra.mxu0 0.0
    %1038 = vmatprep.subr.mxu0 0.0
    %1039 = vmatpush1.msra.mxu0 0.0
    %1040 = vmatprep.subr.mxu0 0.0
    %1041 = vmatpush1.msra.mxu0 0.0
    %1042 = vmatprep.subr.mxu0 0.0
    %1043 = vmatpush1.msra.mxu0 0.0
    %1044 = vmatprep.mubr.f32.mxu0 0.0
    %1045 = vmatmul.mubr.f32.gmra.mrb[0].mxu0 %v978
    %v1046 = vpop.f32.mrb[0].mxu0
    %v1047 = vadd.f32 0.0, %v1046
    %v1048 = vpop.f32.mrb[0].mxu0
    %1049 = vdwg.mxu0
    %v1051 = vsel %vm400, %v974, 0
    %1053 = vmatprep.subr.mxu0 0.0
    %1054 = vmatpush1.msra.mxu0 %v976
    %1055 = vmatprep.subr.mxu0 0.0
    %1056 = vmatpush1.msra.mxu0 0.0
    %1057 = vmatprep.subr.mxu0 0.0
    %1058 = vmatpush1.msra.mxu0 0.0
    %1059 = vmatprep.subr.mxu0 0.0
    %1060 = vmatpush1.msra.mxu0 0.0
    %1061 = vmatprep.subr.mxu0 0.0
    %1062 = vmatpush1.msra.mxu0 0.0
    %1063 = vmatprep.subr.mxu0 0.0
    %1064 = vmatpush1.msra.mxu0 0.0
    %1065 = vmatprep.subr.mxu0 0.0
    %1066 = vmatpush1.msra.mxu0 0.0
    %1067 = vmatprep.subr.mxu0 0.0
    %1068 = vmatpush1.msra.mxu0 0.0
    %1069 = vmatprep.subr.mxu0 0.0
    %1070 = vmatpush1.msra.mxu0 0.0
    %1071 = vmatprep.subr.mxu0 0.0
    %1072 = vmatpush1.msra.mxu0 0.0
    %1073 = vmatprep.subr.mxu0 0.0
    %1074 = vmatpush1.msra.mxu0 0.0
    %1075 = vmatprep.subr.mxu0 0.0
    %1076 = vmatpush1.msra.mxu0 0.0
    %1077 = vmatprep.subr.mxu0 0.0
    %1078 = vmatpush1.msra.mxu0 0.0
    %1079 = vmatprep.subr.mxu0 0.0
    %1080 = vmatpush1.msra.mxu0 0.0
    %1081 = vmatprep.subr.mxu0 0.0
    %1082 = vmatpush1.msra.mxu0 0.0
    %1083 = vmatprep.subr.mxu0 0.0
    %1084 = vmatpush1.msra.mxu0 0.0
    %1085 = vmatprep.subr.mxu0 0.0
    %1086 = vmatpush1.msra.mxu0 0.0
    %1087 = vmatprep.subr.mxu0 0.0
    %1088 = vmatpush1.msra.mxu0 0.0
    %1089 = vmatprep.subr.mxu0 0.0
    %1090 = vmatpush1.msra.mxu0 0.0
    %1091 = vmatprep.subr.mxu0 0.0
    %1092 = vmatpush1.msra.mxu0 0.0
    %1093 = vmatprep.subr.mxu0 0.0
    %1094 = vmatpush1.msra.mxu0 0.0
    %1095 = vmatprep.subr.mxu0 0.0
    %1096 = vmatpush1.msra.mxu0 0.0
    %1097 = vmatprep.subr.mxu0 0.0
    %1098 = vmatpush1.msra.mxu0 0.0
    %1099 = vmatprep.subr.mxu0 0.0
    %1100 = vmatpush1.msra.mxu0 0.0
    %1101 = vmatprep.subr.mxu0 0.0
    %1102 = vmatpush1.msra.mxu0 0.0
    %1103 = vmatprep.subr.mxu0 0.0
    %1104 = vmatpush1.msra.mxu0 0.0
    %1105 = vmatprep.subr.mxu0 0.0
    %1106 = vmatpush1.msra.mxu0 0.0
    %1107 = vmatprep.subr.mxu0 0.0
    %1108 = vmatpush1.msra.mxu0 0.0
    %1109 = vmatprep.subr.mxu0 0.0
    %1110 = vmatpush1.msra.mxu0 0.0
    %1111 = vmatprep.subr.mxu0 0.0
    %1112 = vmatpush1.msra.mxu0 0.0
    %1113 = vmatprep.subr.mxu0 0.0
    %1114 = vmatpush1.msra.mxu0 0.0
    %1115 = vmatprep.subr.mxu0 0.0
    %1116 = vmatpush1.msra.mxu0 0.0
    %1117 = vmatprep.mubr.f32.mxu0 0.0
    %1118 = vmatmul.mubr.f32.gmra.mrb[0].mxu0 %v1051
    %v1119 = vpop.f32.mrb[0].mxu0
    %v1120 = vadd.f32 0.0, %v1119
    %v1121 = vpop.f32.mrb[0].mxu0
    %1122 = vdwg.mxu0
    %v1123 = vld [vmem:[#allocation10] sm:$0xff]
    %v1124 = vld [vmem:[#allocation10 + $0x8] sm:$0xff]
    %v1125 = vld [vmem:[#allocation10 + $0x10] sm:$0xff]
    %v1126 = vld [vmem:[#allocation10 + $0x18] sm:$0xff]
    %v1127 = vlaneseq
    %v1128 = vshrl.u32 %v1127, 7
    %v1129 = vsub.s32 1, %v1128
    %v1130 = vrot.slane %v148, %v1129
    %v1132 = vsel %vm160, %v1047, 0
    %v1135 = vsel %vm160, %v1120, 0
    %1137 = vmatprep.subr.mxu0 0.0
    %1138 = vmatpush1.msra.mxu0 %v1123
    %1139 = vmatprep.subr.mxu0 0.0
    %1140 = vmatpush1.msra.mxu0 %v1124
    %1141 = vmatprep.subr.mxu0 0.0
    %1142 = vmatpush1.msra.mxu0 %v1125
    %1143 = vmatprep.subr.mxu0 0.0
    %1144 = vmatpush1.msra.mxu0 %v1126
    %1145 = vmatprep.subr.mxu0 0.0
    %1146 = vmatpush1.msra.mxu0 0.0
    %1147 = vmatprep.subr.mxu0 0.0
    %1148 = vmatpush1.msra.mxu0 0.0
    %1149 = vmatprep.subr.mxu0 0.0
    %1150 = vmatpush1.msra.mxu0 0.0
    %1151 = vmatprep.subr.mxu0 0.0
    %1152 = vmatpush1.msra.mxu0 0.0
    %1153 = vmatprep.subr.mxu0 0.0
    %1154 = vmatpush1.msra.mxu0 0.0
    %1155 = vmatprep.subr.mxu0 0.0
    %1156 = vmatpush1.msra.mxu0 0.0
    %1157 = vmatprep.subr.mxu0 0.0
    %1158 = vmatpush1.msra.mxu0 0.0
    %1159 = vmatprep.subr.mxu0 0.0
    %1160 = vmatpush1.msra.mxu0 0.0
    %1161 = vmatprep.subr.mxu0 0.0
    %1162 = vmatpush1.msra.mxu0 0.0
    %1163 = vmatprep.subr.mxu0 0.0
    %1164 = vmatpush1.msra.mxu0 0.0
    %1165 = vmatprep.subr.mxu0 0.0
    %1166 = vmatpush1.msra.mxu0 0.0
    %1167 = vmatprep.subr.mxu0 0.0
    %1168 = vmatpush1.msra.mxu0 0.0
    %1169 = vmatprep.subr.mxu0 0.0
    %1170 = vmatpush1.msra.mxu0 0.0
    %1171 = vmatprep.subr.mxu0 0.0
    %1172 = vmatpush1.msra.mxu0 0.0
    %1173 = vmatprep.subr.mxu0 0.0
    %1174 = vmatpush1.msra.mxu0 0.0
    %1175 = vmatprep.subr.mxu0 0.0
    %1176 = vmatpush1.msra.mxu0 0.0
    %1177 = vmatprep.subr.mxu0 0.0
    %1178 = vmatpush1.msra.mxu0 0.0
    %1179 = vmatprep.subr.mxu0 0.0
    %1180 = vmatpush1.msra.mxu0 0.0
    %1181 = vmatprep.subr.mxu0 0.0
    %1182 = vmatpush1.msra.mxu0 0.0
    %1183 = vmatprep.subr.mxu0 0.0
    %1184 = vmatpush1.msra.mxu0 0.0
    %1185 = vmatprep.subr.mxu0 0.0
    %1186 = vmatpush1.msra.mxu0 0.0
    %1187 = vmatprep.subr.mxu0 0.0
    %1188 = vmatpush1.msra.mxu0 0.0
    %1189 = vmatprep.subr.mxu0 0.0
    %1190 = vmatpush1.msra.mxu0 0.0
    %1191 = vmatprep.subr.mxu0 0.0
    %1192 = vmatpush1.msra.mxu0 0.0
    %1193 = vmatprep.subr.mxu0 0.0
    %1194 = vmatpush1.msra.mxu0 0.0
    %1195 = vmatprep.subr.mxu0 0.0
    %1196 = vmatpush1.msra.mxu0 0.0
    %1197 = vmatprep.subr.mxu0 0.0
    %1198 = vmatpush1.msra.mxu0 0.0
    %1199 = vmatprep.subr.mxu0 0.0
    %1200 = vmatpush1.msra.mxu0 0.0
    %1201 = vmatprep.mubr.f32.mxu0 0.0
    %1202 = vmatmul.mubr.f32.gmra.mrb[0].mxu0 %v1132
    %v1203 = vpop.f32.mrb[0].mxu0
    %v1204 = vadd.f32 %v1130, %v1203
    %v1205 = vpop.f32.mrb[0].mxu0
    %1206 = vmatprep.mubr.f32.mxu0 0.0
    %1207 = vmatmul.mubr.f32.gmra.mrb[0].mxu0 %v1135
    %v1208 = vpop.f32.mrb[0].mxu0
    %v1209 = vadd.f32 %v1130, %v1208
    %v1210 = vpop.f32.mrb[0].mxu0
    %1211 = vdwg.mxu0
    %v1212 = vadd.f32 %v1204, %v703
    %v1213 = vadd.f32 %v1209, %v704
    %v1214 = vsel %vm160, %v1212, 0.0
    %1215 = vadd.xlane.f32.xlu0 %v1214
    %v1216 = vpop.xlane.xlu0 %1215
    %v1217 = vsel %vm160, %v1213, 0.0
    %1218 = vadd.xlane.f32.xlu0 %v1217
    %v1219 = vpop.xlane.xlu0 %1218
    %v1220 = vmul.f32 %v1216, %v672
    %v1221 = vmul.f32 %v1219, %v672
    %v1222 = vsub.f32 %v1212, %v1220
    %v1223 = vsub.f32 %v1213, %v1221
    %v1224 = vmul.f32 %v1222, %v1222
    %v1225 = vmul.f32 %v1223, %v1223
    %v1226 = vsel %vm160, %v1224, 0.0
    %1227 = vadd.xlane.f32.xlu0 %v1226
    %v1228 = vpop.xlane.xlu0 %1227
    %v1229 = vsel %vm160, %v1225, 0.0
    %1230 = vadd.xlane.f32.xlu0 %v1229
    %v1231 = vpop.xlane.xlu0 %1230
    %v1232 = vmul.f32 %v1228, %v672
    %v1233 = vmul.f32 %v1231, %v672
    %v1234 = vadd.f32 %v1232, 1e-05
    %v1235 = vadd.f32 %v1233, 1e-05
    %v1236 = vrsqrt.pop %v1234
    %v1237 = vrsqrt.pop %v1235
    %v1238 = vmul.f32 %v1222, %v1236
    %v1239 = vmul.f32 %v1223, %v1237
    %v1240 = vlaneseq
    %v1241 = vshrl.u32 %v1240, 7
    %v1242 = vsub.s32 1, %v1241
    %v1243 = vrot.slane %v146, %v1242
    %v1244 = vmul.f32 %v1238, %v1243
    %v1245 = vmul.f32 %v1239, %v1243
    %v1246 = vlaneseq
    %v1247 = vshrl.u32 %v1246, 7
    %v1248 = vsub.s32 1, %v1247
    %v1249 = vrot.slane %v147, %v1248
    %v1250 = vadd.f32 %v1244, %v1249
    %v1251 = vadd.f32 %v1245, %v1249
    %v1252 = vld [vmem:[#allocation11] sm:$0xff]
    %v1253 = vld [vmem:[#allocation11 + $0x8] sm:$0xff]
    %v1254 = vld [vmem:[#allocation11 + $0x10] sm:$0xff]
    %v1255 = vld [vmem:[#allocation11 + $0x18] sm:$0xff]
    %v1256 = vld [vmem:[#allocation13] sm:$0x1]
    %v1258 = vlaneseq
    %v1259 = vshrl.u32 %v1258, 7
    %v1260 = vsub.s32 0, %v1259
    %v1261 = vrot.slane %v1256, %v1260
    %v1264 = vsel %vm160, %v1250, 0
    %v1267 = vsel %vm160, %v1251, 0
    %1269 = vmatprep.subr.mxu0 0.0
    %1270 = vmatpush1.msra.mxu0 %v1252
    %1271 = vmatprep.subr.mxu0 0.0
    %1272 = vmatpush1.msra.mxu0 %v1253
    %1273 = vmatprep.subr.mxu0 0.0
    %1274 = vmatpush1.msra.mxu0 %v1254
    %1275 = vmatprep.subr.mxu0 0.0
    %1276 = vmatpush1.msra.mxu0 %v1255
    %1277 = vmatprep.subr.mxu0 0.0
    %1278 = vmatpush1.msra.mxu0 0.0
    %1279 = vmatprep.subr.mxu0 0.0
    %1280 = vmatpush1.msra.mxu0 0.0
    %1281 = vmatprep.subr.mxu0 0.0
    %1282 = vmatpush1.msra.mxu0 0.0
    %1283 = vmatprep.subr.mxu0 0.0
    %1284 = vmatpush1.msra.mxu0 0.0
    %1285 = vmatprep.subr.mxu0 0.0
    %1286 = vmatpush1.msra.mxu0 0.0
    %1287 = vmatprep.subr.mxu0 0.0
    %1288 = vmatpush1.msra.mxu0 0.0
    %1289 = vmatprep.subr.mxu0 0.0
    %1290 = vmatpush1.msra.mxu0 0.0
    %1291 = vmatprep.subr.mxu0 0.0
    %1292 = vmatpush1.msra.mxu0 0.0
    %1293 = vmatprep.subr.mxu0 0.0
    %1294 = vmatpush1.msra.mxu0 0.0
    %1295 = vmatprep.subr.mxu0 0.0
    %1296 = vmatpush1.msra.mxu0 0.0
    %1297 = vmatprep.subr.mxu0 0.0
    %1298 = vmatpush1.msra.mxu0 0.0
    %1299 = vmatprep.subr.mxu0 0.0
    %1300 = vmatpush1.msra.mxu0 0.0
    %1301 = vmatprep.subr.mxu0 0.0
    %1302 = vmatpush1.msra.mxu0 0.0
    %1303 = vmatprep.subr.mxu0 0.0
    %1304 = vmatpush1.msra.mxu0 0.0
    %1305 = vmatprep.subr.mxu0 0.0
    %1306 = vmatpush1.msra.mxu0 0.0
    %1307 = vmatprep.subr.mxu0 0.0
    %1308 = vmatpush1.msra.mxu0 0.0
    %1309 = vmatprep.subr.mxu0 0.0
    %1310 = vmatpush1.msra.mxu0 0.0
    %1311 = vmatprep.subr.mxu0 0.0
    %1312 = vmatpush1.msra.mxu0 0.0
    %1313 = vmatprep.subr.mxu0 0.0
    %1314 = vmatpush1.msra.mxu0 0.0
    %1315 = vmatprep.subr.mxu0 0.0
    %1316 = vmatpush1.msra.mxu0 0.0
    %1317 = vmatprep.subr.mxu0 0.0
    %1318 = vmatpush1.msra.mxu0 0.0
    %1319 = vmatprep.subr.mxu0 0.0
    %1320 = vmatpush1.msra.mxu0 0.0
    %1321 = vmatprep.subr.mxu0 0.0
    %1322 = vmatpush1.msra.mxu0 0.0
    %1323 = vmatprep.subr.mxu0 0.0
    %1324 = vmatpush1.msra.mxu0 0.0
    %1325 = vmatprep.subr.mxu0 0.0
    %1326 = vmatpush1.msra.mxu0 0.0
    %1327 = vmatprep.subr.mxu0 0.0
    %1328 = vmatpush1.msra.mxu0 0.0
    %1329 = vmatprep.subr.mxu0 0.0
    %1330 = vmatpush1.msra.mxu0 0.0
    %1331 = vmatprep.subr.mxu0 0.0
    %1332 = vmatpush1.msra.mxu0 0.0
    %1333 = vmatprep.mubr.f32.mxu0 0.0
    %1334 = vmatmul.mubr.f32.gmra.mrb[0].mxu0 %v1264
    %v1335 = vpop.f32.mrb[0].mxu0
    %v1336 = vadd.f32 %v1261, %v1335
    %v1337 = vpop.f32.mrb[0].mxu0
    %1338 = vmatprep.mubr.f32.mxu0 0.0
    %1339 = vmatmul.mubr.f32.gmra.mrb[0].mxu0 %v1267
    %v1340 = vpop.f32.mrb[0].mxu0
    %v1341 = vadd.f32 %v1261, %v1340
    %v1342 = vpop.f32.mrb[0].mxu0
    %1343 = vdwg.mxu0
    %v1344 = vmax.f32 %v1336, 0.0
    %v1345 = vmax.f32 %v1341, 0.0
    %v1346 = vld [vmem:[%s11] sm:$0xff]
    %v1347 = vld [vmem:[%s11 + $0x8] sm:$0xff]
    %v1348 = vld [vmem:[%s11 + $0x10] sm:$0xff]
    %v1349 = vld [vmem:[%s11 + $0x18] sm:$0xff]
    %v1350 = vld [vmem:[%s11 + $0x20] sm:$0xff]
    %v1351 = vld [vmem:[%s11 + $0x28] sm:$0xff]
    %v1352 = vld [vmem:[%s11 + $0x30] sm:$0xff]
    %v1353 = vld [vmem:[%s11 + $0x38] sm:$0xff]
    %v1354 = vlaneseq
    %v1355 = vshrl.u32 %v1354, 7
    %v1356 = vsub.s32 2, %v1355
    %v1357 = vrot.slane %v148, %v1356
    %vm1358 = vcmask 523264
    %v1360 = vsel %vm1358, %v1344, 0
    %v1363 = vsel %vm1358, %v1345, 0
    %1365 = vmatprep.subr.mxu0 0.0
    %1366 = vmatpush1.msra.mxu0 %v1346
    %1367 = vmatprep.subr.mxu0 0.0
    %1368 = vmatpush1.msra.mxu0 %v1347
    %1369 = vmatprep.subr.mxu0 0.0
    %1370 = vmatpush1.msra.mxu0 %v1348
    %1371 = vmatprep.subr.mxu0 0.0
    %1372 = vmatpush1.msra.mxu0 %v1349
    %1373 = vmatprep.subr.mxu0 0.0
    %1374 = vmatpush1.msra.mxu0 %v1350
    %1375 = vmatprep.subr.mxu0 0.0
    %1376 = vmatpush1.msra.mxu0 %v1351
    %1377 = vmatprep.subr.mxu0 0.0
    %1378 = vmatpush1.msra.mxu0 %v1352
    %1379 = vmatprep.subr.mxu0 0.0
    %1380 = vmatpush1.msra.mxu0 %v1353
    %1381 = vmatprep.subr.mxu0 0.0
    %1382 = vmatpush1.msra.mxu0 0.0
    %1383 = vmatprep.subr.mxu0 0.0
    %1384 = vmatpush1.msra.mxu0 0.0
    %1385 = vmatprep.subr.mxu0 0.0
    %1386 = vmatpush1.msra.mxu0 0.0
    %1387 = vmatprep.subr.mxu0 0.0
    %1388 = vmatpush1.msra.mxu0 0.0
    %1389 = vmatprep.subr.mxu0 0.0
    %1390 = vmatpush1.msra.mxu0 0.0
    %1391 = vmatprep.subr.mxu0 0.0
    %1392 = vmatpush1.msra.mxu0 0.0
    %1393 = vmatprep.subr.mxu0 0.0
    %1394 = vmatpush1.msra.mxu0 0.0
    %1395 = vmatprep.subr.mxu0 0.0
    %1396 = vmatpush1.msra.mxu0 0.0
    %1397 = vmatprep.subr.mxu0 0.0
    %1398 = vmatpush1.msra.mxu0 0.0
    %1399 = vmatprep.subr.mxu0 0.0
    %1400 = vmatpush1.msra.mxu0 0.0
    %1401 = vmatprep.subr.mxu0 0.0
    %1402 = vmatpush1.msra.mxu0 0.0
    %1403 = vmatprep.subr.mxu0 0.0
    %1404 = vmatpush1.msra.mxu0 0.0
    %1405 = vmatprep.subr.mxu0 0.0
    %1406 = vmatpush1.msra.mxu0 0.0
    %1407 = vmatprep.subr.mxu0 0.0
    %1408 = vmatpush1.msra.mxu0 0.0
    %1409 = vmatprep.subr.mxu0 0.0
    %1410 = vmatpush1.msra.mxu0 0.0
    %1411 = vmatprep.subr.mxu0 0.0
    %1412 = vmatpush1.msra.mxu0 0.0
    %1413 = vmatprep.subr.mxu0 0.0
    %1414 = vmatpush1.msra.mxu0 0.0
    %1415 = vmatprep.subr.mxu0 0.0
    %1416 = vmatpush1.msra.mxu0 0.0
    %1417 = vmatprep.subr.mxu0 0.0
    %1418 = vmatpush1.msra.mxu0 0.0
    %1419 = vmatprep.subr.mxu0 0.0
    %1420 = vmatpush1.msra.mxu0 0.0
    %1421 = vmatprep.subr.mxu0 0.0
    %1422 = vmatpush1.msra.mxu0 0.0
    %1423 = vmatprep.subr.mxu0 0.0
    %1424 = vmatpush1.msra.mxu0 0.0
    %1425 = vmatprep.subr.mxu0 0.0
    %1426 = vmatpush1.msra.mxu0 0.0
    %1427 = vmatprep.subr.mxu0 0.0
    %1428 = vmatpush1.msra.mxu0 0.0
    %1429 = vmatprep.mubr.f32.mxu0 0.0
    %1430 = vmatmul.mubr.f32.gmra.mrb[0].mxu0 %v1360
    %v1431 = vpop.f32.mrb[0].mxu0
    %v1432 = vadd.f32 %v1357, %v1431
    %v1433 = vpop.f32.mrb[0].mxu0
    %1434 = vmatprep.mubr.f32.mxu0 0.0
    %1435 = vmatmul.mubr.f32.gmra.mrb[0].mxu0 %v1363
    %v1436 = vpop.f32.mrb[0].mxu0
    %v1437 = vadd.f32 %v1357, %v1436
    %v1438 = vpop.f32.mrb[0].mxu0
    %1439 = vdwg.mxu0
    %v1440 = vadd.f32 %v1432, %v1250
    %v1441 = vadd.f32 %v1437, %v1251
    %v1442 = vsel %vm160, %v1440, 0.0
    %1443 = vadd.xlane.f32.xlu0 %v1442
    %v1444 = vpop.xlane.xlu0 %1443
    %v1445 = vsel %vm160, %v1441, 0.0
    %1446 = vadd.xlane.f32.xlu0 %v1445
    %v1447 = vpop.xlane.xlu0 %1446
    %v1448 = vmul.f32 %v1444, %v672
    %v1449 = vmul.f32 %v1447, %v672
    %v1450 = vsub.f32 %v1440, %v1448
    %v1451 = vsub.f32 %v1441, %v1449
    %v1452 = vmul.f32 %v1450, %v1450
    %v1453 = vmul.f32 %v1451, %v1451
    %v1454 = vsel %vm160, %v1452, 0.0
    %1455 = vadd.xlane.f32.xlu0 %v1454
    %v1456 = vpop.xlane.xlu0 %1455
    %v1457 = vsel %vm160, %v1453, 0.0
    %1458 = vadd.xlane.f32.xlu0 %v1457
    %v1459 = vpop.xlane.xlu0 %1458
    %v1460 = vmul.f32 %v1456, %v672
    %v1461 = vmul.f32 %v1459, %v672
    %v1462 = vadd.f32 %v1460, 1e-05
    %v1463 = vadd.f32 %v1461, 1e-05
    %v1464 = vrsqrt.pop %v1462
    %v1465 = vrsqrt.pop %v1463
    %v1466 = vmul.f32 %v1450, %v1464
    %v1467 = vmul.f32 %v1451, %v1465
    %v1468 = vlaneseq
    %v1469 = vshrl.u32 %v1468, 7
    %v1470 = vsub.s32 2, %v1469
    %v1471 = vrot.slane %v146, %v1470
    %v1472 = vmul.f32 %v1466, %v1471
    %v1473 = vmul.f32 %v1467, %v1471
    %v1474 = vlaneseq
    %v1475 = vshrl.u32 %v1474, 7
    %v1476 = vsub.s32 2, %v1475
    %v1477 = vrot.slane %v147, %v1476
    %v1478 = vadd.f32 %v1472, %v1477
    %v1479 = vadd.f32 %v1473, %v1477
    %1480 = vst.msk [vmem:[#allocation14] sm:$0xff] %vm160, %v1478
    %1481 = vst.msk [vmem:[#allocation14 + $0x8] sm:$0xff] %vm160, %v1479
    %1482 = vst.msk [vmem:[%s16] sm:$0xff] %vm400, %v973
    %1483 = vst.msk [vmem:[%s16 + $0x8] sm:$0xff] %vm400, %v974
    // Predicated region
    $region90: #{tpu_custom_call.1} parent=1 // pred_check
      _
    $region91: #{tpu_custom_call.1} parent=1 // pred_check_branch
      %1485 = sbr.rel (0) target = $region93
    $region92: #{tpu_custom_call.1} parent=1 // pred_region
      %s1487 = ssub.s32 256, 256
      %1488 = vsyncadd [#allocation4], %s1487
      %s1489 = sshll.u32 [#allocation14], 4
      %s1490 = int_to_ptr.vmem [resolvable:$true] %s1489
      %1495 = dma.vmem_to_hbm [thread:$0]  %s1490, 256, %s15, [#allocation4], 128, 128, 8
    $region93: #{tpu_custom_call.1} parent=1 // pred_fallthru
      _
    // Predicated region
    $region94: #{tpu_custom_call.1} parent=1 // pred_check
      _
    $region95: #{tpu_custom_call.1} parent=1 // pred_check_branch
      %1497 = sbr.rel (0) target = $region97
    $region96: #{tpu_custom_call.1} parent=1 // pred_region
      _
    $region97: #{tpu_custom_call.1} parent=1 // pred_fallthru
      _
    // Predicated region
    $region98: #{tpu_custom_call.1} parent=1 // pred_check
      _
    $region99: #{tpu_custom_call.1} parent=1 // pred_check_branch
      %1499 = sbr.rel (0) target = $region101
    $region100: #{tpu_custom_call.1} parent=1 // pred_region
      %1500 = dma.done [#allocation4], 256
    $region101: #{tpu_custom_call.1} parent=1 // pred_fallthru
      _
    // Predicated region
    $region102: #{tpu_custom_call.1} parent=1 // pred_check
      _
    $region103: #{tpu_custom_call.1} parent=1 // pred_check_branch
      %1502 = sbr.rel (0) target = $region105
    $region104: #{tpu_custom_call.1} parent=1 // pred_region
      _
    $region105: #{tpu_custom_call.1} parent=1 // pred_fallthru
      _
    %1503 = vsyncpa [#allocation3], 1
    %1504 = vsyncpa [#allocation6], 1
    %1505 = vsyncpa [#allocation9], 1
    %1506 = vsyncpa [#allocation12], 1
    %1507 = vsyncpa [#allocation4], 1

</llo_original>
